<compile_context>
chip_gen: v5e
topology: v5e:2x2
jax: 0.10.0
libtpu: 0.0.40
codegen_flags: <defaults>
</compile_context>

<pallas_src>
import functools
import math

import jax
import jax.numpy as jnp
import numpy as np
from jax import lax
from jax.experimental import pallas as pl
from jax.experimental.pallas import tpu as pltpu


def _round_up(n, m):
    return ((n + m - 1) // m) * m


def _bsrbf_kernel(x_ref, gamma_ref, beta_ref, w_ref, o_ref, *,
                  knots, rbf_centers, inv_rbf_denom, spline_order, grid_h,
                  chunk_rows, eps):
    """One (tb, D) batch tile: LayerNorm -> [SiLU | spline+RBF] -> streamed matmul."""
    tb, D = x_ref.shape
    G = len(rbf_centers)
    n_knots = len(knots)
    n_chunks = tb // chunk_rows

    # Hoist the LN affine params out of the chunk loop (broadcasts aren't CSE'd).
    gamma = jnp.broadcast_to(gamma_ref[...].astype(jnp.float32), (chunk_rows, D))
    beta = jnp.broadcast_to(beta_ref[...].astype(jnp.float32), (chunk_rows, D))

    @pl.loop(0, n_chunks)
    def _(c):
        row = pl.multiple_of(c * chunk_rows, chunk_rows)
        x = x_ref[pl.ds(row, chunk_rows), :].astype(jnp.float32)

        # --- LayerNorm over the feature (last) dim ---
        mu = jnp.mean(x, axis=-1, keepdims=True)
        xc = x - mu
        var = jnp.mean(xc * xc, axis=-1, keepdims=True)
        xn = xc * lax.rsqrt(var + eps) * gamma + beta

        # --- base branch: SiLU(xn), streamed straight into the MXU ---
        # (lax.logistic lowers to the EUP slot, off the saturated VPU path.)
        silu = xn * lax.logistic(xn)
        acc = jnp.dot(silu, w_ref[0:D, :], preferred_element_type=jnp.float32)

        # --- shared B-spline pyramid (uniform knots), computed once per chunk ---
        # Order 0: half-open indicators [knot_j, knot_{j+1}) as differences of
        # monotone step functions (no '&' needed).
        s = [(xn >= knots[j]).astype(jnp.float32) for j in range(n_knots)]
        b = [s[j] - s[j + 1] for j in range(n_knots - 1)]
        for k in range(1, spline_order + 1):
            inv_kh = 1.0 / (k * grid_h)      # compile-time reciprocal: no vdiv
            inv_k = 1.0 / k
            n_new = len(b) - 1
            # Running left coefficient L_j = (xn - knots[j]) / (k*h); uniform
            # knots give L_{j+1} = L_j - 1/k and right_j = 1 - L_{j+1}.
            l_j = (xn - knots[0]) * inv_kh
            new_b = []
            for j in range(n_new):
                l_j1 = l_j - inv_k
                new_b.append(l_j * b[j] + (1.0 - l_j1) * b[j + 1])
                l_j = l_j1
            b = new_b                        # len(b) == G after the last level

        # --- per-basis feature block = B-spline + RBF, streamed to the MXU ---
        # Per-block dots hide under the VPU work of the next basis; no Phi slab.
        for g in range(G):
            u = (xn - rbf_centers[g]) * inv_rbf_denom
            feat = b[g] + jnp.exp(-(u * u))
            acc = acc + jnp.dot(feat, w_ref[(g + 1) * D:(g + 2) * D, :],
                                preferred_element_type=jnp.float32)

        o_ref[pl.ds(row, chunk_rows), :] = acc.astype(o_ref.dtype)


def bsrbf_kan_layer(x, gamma, beta, base_weight, spline_weight, *,
                    grid_size=5, spline_order=3, grid_range=(-1.5, 1.5),
                    tile_b=128, chunk_rows=16):
    B, D = x.shape
    O = base_weight.shape[0]
    G = grid_size + spline_order
    assert spline_weight.shape == (O, D * G)
    assert tile_b % 8 == 0
    # TODO(synk): if D is not a multiple of 128 in production, pad the per-basis
    # feature/weight-row stride to round_up(D, 128) so every block stays
    # lane-aligned (current code is correct for any D, just less lane-efficient).

    # Static spline knots / RBF centers (compile-time constants).
    h = (grid_range[1] - grid_range[0]) / grid_size
    knots = tuple(float(grid_range[0] + (j - spline_order) * h)
                  for j in range(grid_size + 2 * spline_order + 1))
    rbf_centers = tuple(
        float(grid_range[0] + i * (grid_range[1] - grid_range[0]) / (G - 1))
        for i in range(G))
    inv_rbf_denom = float((G - 1) / (grid_range[1] - grid_range[0]))

    # Fuse base + spline weights into one ((G+1)*D, O) matrix.  spline_weight
    # columns are ordered d*G + g; the kernel's feature blocks are g-major, so
    # reorder to rows g*D + d (base_weight.T occupies the first D rows).
    ws_t = spline_weight.reshape(O, D, G).transpose(2, 1, 0).reshape(G * D, O)
    w_all = jnp.concatenate([base_weight.T, ws_t], axis=0)        # ((G+1)*D, O)

    # Lane-dense output: pad O to a multiple of 128 (zero weight columns),
    # slice back after the call.
    O_pad = _round_up(O, 128)
    if O_pad != O:
        w_all = jnp.pad(w_all, ((0, 0), (0, O_pad - O)))
    # TODO(synk): for production D*O (resident weight block >> a few MiB) add an
    # O grid axis (tile_o multiple of 256) and/or store w_all in bf16 so the
    # block fits v7x's 64 MiB VMEM; on v5e cast the MXU inputs to bf16.

    # Batch tiling: zero-pad B to a multiple of the tile (LayerNorm of zero rows
    # is finite; padded outputs are discarded).  tile_b=128 keeps the batch grid
    # length even for v7x's 2 TensorCores; on single-TC v5e/v6e tile_b can be
    # raised to 256-512 to amortize the ~0.35 us per-grid-step overhead.
    tb = min(tile_b, _round_up(B, 8))
    B_pad = _round_up(B, tb)
    x_p = jnp.pad(x, ((0, B_pad - B), (0, 0))) if B_pad != B else x

    cr = min(chunk_rows, tb)
    if tb % cr:
        cr = 8

    gamma2 = gamma.reshape(1, D)
    beta2 = beta.reshape(1, D)

    kernel = functools.partial(
        _bsrbf_kernel, knots=knots, rbf_centers=rbf_centers,
        inv_rbf_denom=inv_rbf_denom, spline_order=spline_order, grid_h=h,
        chunk_rows=cr, eps=1e-5)

    # VMEM budget: double-buffered x/out tiles + resident fused weight + slack
    # for compiler-internal scratch (well under v7x's 64 MiB per-TC VMEM).
    vmem_need = 8 * (tb * D + tb * O_pad + (G + 1) * D * O_pad)
    vmem_limit = max(min(vmem_need + (4 << 20), 32 << 20), 8 << 20)

    out = pl.pallas_call(
        kernel,
        out_shape=jax.ShapeDtypeStruct((B_pad, O_pad), x.dtype),
        grid_spec=pltpu.PrefetchScalarGridSpec(
            num_scalar_prefetch=0,
            grid=(B_pad // tb,),
            in_specs=[
                pl.BlockSpec((tb, D), lambda i: (i, 0)),               # x tile
                pl.BlockSpec((1, D), lambda i: (0, 0)),                # LN gamma
                pl.BlockSpec((1, D), lambda i: (0, 0)),                # LN beta
                pl.BlockSpec(((G + 1) * D, O_pad), lambda i: (0, 0)),  # fused W
            ],
            out_specs=pl.BlockSpec((tb, O_pad), lambda i: (i, 0)),
        ),
        compiler_params=pltpu.CompilerParams(
            dimension_semantics=("parallel",),
            vmem_limit_bytes=vmem_limit),
    )(x_p, gamma2, beta2, w_all)

    return out[:B, :O]


def _reference(x, gamma, beta, base_weight, spline_weight,
               grid_size=5, spline_order=3, grid_range=(-1.5, 1.5)):
    """Pure-JAX re-implementation of the PyTorch forward, for validation."""
    B, D = x.shape
    G = grid_size + spline_order
    mu = jnp.mean(x, -1, keepdims=True)
    var = jnp.mean((x - mu) ** 2, -1, keepdims=True)
    xn = (x - mu) / jnp.sqrt(var + 1e-5) * gamma + beta
    base_out = jax.nn.silu(xn) @ base_weight.T

    h = (grid_range[1] - grid_range[0]) / grid_size
    knots = (jnp.arange(-spline_order, grid_size + spline_order + 1,
                        dtype=jnp.float32) * h + grid_range[0])
    grid = jnp.broadcast_to(knots, (D, knots.shape[0]))
    xe = xn[..., None]
    bases = ((xe >= grid[:, :-1]) & (xe < grid[:, 1:])).astype(xn.dtype)
    for k in range(1, spline_order + 1):
        bases = ((xe - grid[:, :-(k + 1)]) /
                 (grid[:, k:-1] - grid[:, :-(k + 1)]) * bases[:, :, :-1] +
                 (grid[:, k + 1:] - xe) /
                 (grid[:, k + 1:] - grid[:, 1:-k]) * bases[:, :, 1:])
    bs = bases.reshape(B, -1)

    rbf_grid = jnp.linspace(grid_range[0], grid_range[1], G)
    denom = (grid_range[1] - grid_range[0]) / (G - 1)
    rbf = jnp.exp(-((xe - rbf_grid) / denom) ** 2).reshape(B, -1)

    spline_out = (bs + rbf) @ spline_weight.T
    return base_out + spline_out


if __name__ == "__main__":
    # (batch, input_dim) -> (batch, output_dim).  batch=256 gives two parallel
    # grid steps at tile_b=128 (exercises v7x megacore sharding).
    batch, input_dim, output_dim = 256, 128, 64
    grid_size, spline_order = 5, 3
    G = grid_size + spline_order

    key = jax.random.PRNGKey(0)
    kx, kb, ks = jax.random.split(key, 3)

    x = jax.random.normal(kx, (batch, input_dim), dtype=jnp.float32)

    # kaiming_uniform_(a=sqrt(5)) -> U(-1/sqrt(fan_in), 1/sqrt(fan_in))
    bnd_base = 1.0 / math.sqrt(input_dim)
    base_weight = jax.random.uniform(kb, (output_dim, input_dim),
                                     minval=-bnd_base, maxval=bnd_base,
                                     dtype=jnp.float32)
    bnd_spl = 1.0 / math.sqrt(input_dim * G)
    spline_weight = jax.random.uniform(ks, (output_dim, input_dim * G),
                                       minval=-bnd_spl, maxval=bnd_spl,
                                       dtype=jnp.float32)
    # LayerNorm affine params (PyTorch default init: ones / zeros)
    gamma = jnp.ones((input_dim,), dtype=jnp.float32)
    beta = jnp.zeros((input_dim,), dtype=jnp.float32)

    out = bsrbf_kan_layer(x, gamma, beta, base_weight, spline_weight,
                          grid_size=grid_size, spline_order=spline_order)
    out = jax.block_until_ready(out)

    ref = _reference(x, gamma, beta, base_weight, spline_weight,
                     grid_size=grid_size, spline_order=spline_order)
    np.testing.assert_allclose(np.asarray(out), np.asarray(ref),
                               rtol=1e-4, atol=1e-4)

    print("KERNEL_OK")
</pallas_src>

<mosaic_0001>
module attributes {stable_mosaic.version = 11 : i64} {
  func.func @_bsrbf_kernel(%arg0: i32, %arg1: memref<128x128xf32, #tpu.memory_space<vmem>>, %arg2: memref<1x128xf32, #tpu.memory_space<vmem>>, %arg3: memref<1x128xf32, #tpu.memory_space<vmem>>, %arg4: memref<1152x128xf32, #tpu.memory_space<vmem>>, %arg5: memref<128x128xf32, #tpu.memory_space<vmem>>) attributes {dimension_semantics = [#tpu.dimension_semantics<parallel>], iteration_bounds = array<i64: 2>, scalar_prefetch = 0 : i64, scratch_operands = 0 : i64, tpu.core_type = #tpu.core_type<tc>, window_params = [{transform_indices = @transform_0, window_bounds = array<i64: 128, 128>}, {pipeline_mode = #tpu.pipeline_mode<synchronous>, transform_indices = @transform_1, window_bounds = array<i64: 1, 128>}, {pipeline_mode = #tpu.pipeline_mode<synchronous>, transform_indices = @transform_2, window_bounds = array<i64: 1, 128>}, {pipeline_mode = #tpu.pipeline_mode<synchronous>, transform_indices = @transform_3, window_bounds = array<i64: 1152, 128>}, {transform_indices = @transform_4, window_bounds = array<i64: 128, 128>}]} {
    %c0 = arith.constant 0 : index
    %c0_0 = arith.constant 0 : index
    %0 = vector.load %arg2[%c0, %c0_0] : memref<1x128xf32, #tpu.memory_space<vmem>>, vector<1x128xf32>
    %1 = vector.shape_cast %0 : vector<1x128xf32> to vector<1x128xf32>
    %2 = vector.broadcast %1 : vector<1x128xf32> to vector<16x128xf32>
    %c0_1 = arith.constant 0 : index
    %c0_2 = arith.constant 0 : index
    %3 = vector.load %arg3[%c0_1, %c0_2] : memref<1x128xf32, #tpu.memory_space<vmem>>, vector<1x128xf32>
    %4 = vector.shape_cast %3 : vector<1x128xf32> to vector<1x128xf32>
    %5 = vector.broadcast %4 : vector<1x128xf32> to vector<16x128xf32>
    %c0_i32 = arith.constant 0 : i32
    %c8_i32 = arith.constant 8 : i32
    %6 = arith.addi %c0_i32, %c8_i32 : i32
    %c1_i32 = arith.constant 1 : i32
    scf.for %arg6 = %c0_i32 to %6 step %c1_i32  : i32 {
      %c1_i32_4 = arith.constant 1 : i32
      %7 = arith.muli %arg6, %c1_i32_4 : i32
      %c0_i32_5 = arith.constant 0 : i32
      %8 = arith.addi %c0_i32_5, %7 : i32
      %c16_i32 = arith.constant 16 : i32
      %9 = arith.muli %8, %c16_i32 : i32
      %10 = tpu.assume_multiple %9, 16 : i32
      %11 = arith.index_cast %10 : i32 to index
      %c0_6 = arith.constant 0 : index
      %12 = vector.load %arg1[%11, %c0_6] : memref<128x128xf32, #tpu.memory_space<vmem>>, vector<16x128xf32>
      %cst = arith.constant dense<0.000000e+00> : vector<16xf32>
      %13 = vector.multi_reduction <add>, %12, %cst [1] : vector<16x128xf32> to vector<16xf32>
      %14 = vector.shape_cast %13 : vector<16xf32> to vector<16x1xf32>
      %cst_7 = arith.constant 1.280000e+02 : f32
      %15 = vector.broadcast %cst_7 : f32 to vector<16x1xf32>
      %16 = arith.divf %14, %15 : vector<16x1xf32>
      %17 = vector.broadcast %16 : vector<16x1xf32> to vector<16x128xf32>
      %18 = arith.subf %12, %17 : vector<16x128xf32>
      %19 = arith.mulf %18, %18 : vector<16x128xf32>
      %cst_8 = arith.constant dense<0.000000e+00> : vector<16xf32>
      %20 = vector.multi_reduction <add>, %19, %cst_8 [1] : vector<16x128xf32> to vector<16xf32>
      %21 = vector.shape_cast %20 : vector<16xf32> to vector<16x1xf32>
      %cst_9 = arith.constant 1.280000e+02 : f32
      %22 = vector.broadcast %cst_9 : f32 to vector<16x1xf32>
      %23 = arith.divf %21, %22 : vector<16x1xf32>
      %cst_10 = arith.constant 9.99999974E-6 : f32
      %24 = vector.broadcast %cst_10 : f32 to vector<16x1xf32>
      %25 = arith.addf %23, %24 : vector<16x1xf32>
      %26 = math.rsqrt %25 : vector<16x1xf32>
      %27 = vector.broadcast %26 : vector<16x1xf32> to vector<16x128xf32>
      %28 = arith.mulf %18, %27 : vector<16x128xf32>
      %29 = arith.mulf %28, %2 : vector<16x128xf32>
      %30 = arith.addf %29, %5 : vector<16x128xf32>
      %31 = arith.negf %30 : vector<16x128xf32>
      %32 = math.exp %31 : vector<16x128xf32>
      %cst_11 = arith.constant 1.000000e+00 : f32
      %33 = vector.broadcast %cst_11 : f32 to vector<16x128xf32>
      %34 = arith.addf %33, %32 : vector<16x128xf32>
      %35 = arith.divf %33, %34 : vector<16x128xf32>
      %36 = arith.mulf %30, %35 : vector<16x128xf32>
      %c0_12 = arith.constant 0 : index
      %c0_13 = arith.constant 0 : index
      %37 = vector.load %arg4[%c0_12, %c0_13] : memref<1152x128xf32, #tpu.memory_space<vmem>>, vector<128x128xf32>
      %cst_14 = arith.constant dense<0.000000e+00> : vector<16x128xf32>
      %38 = tpu.matmul %36, %37, %cst_14 {dimension_numbers = #tpu.dot_dimension_numbers<[1], [0], [0], [1], [0, 0, 1, 1], [], []>} : vector<16x128xf32>, vector<128x128xf32>, vector<16x128xf32> -> vector<16x128xf32>
      %cst_15 = arith.constant -3.300000e+00 : f32
      %39 = vector.broadcast %cst_15 : f32 to vector<16x128xf32>
      %40 = arith.cmpf oge, %30, %39 : vector<16x128xf32>
      %41 = arith.extui %40 : vector<16x128xi1> to vector<16x128xi32>
      %42 = arith.sitofp %41 : vector<16x128xi32> to vector<16x128xf32>
      %cst_16 = arith.constant -2.700000e+00 : f32
      %43 = vector.broadcast %cst_16 : f32 to vector<16x128xf32>
      %44 = arith.cmpf oge, %30, %43 : vector<16x128xf32>
      %45 = arith.extui %44 : vector<16x128xi1> to vector<16x128xi32>
      %46 = arith.sitofp %45 : vector<16x128xi32> to vector<16x128xf32>
      %cst_17 = arith.constant -2.100000e+00 : f32
      %47 = vector.broadcast %cst_17 : f32 to vector<16x128xf32>
      %48 = arith.cmpf oge, %30, %47 : vector<16x128xf32>
      %49 = arith.extui %48 : vector<16x128xi1> to vector<16x128xi32>
      %50 = arith.sitofp %49 : vector<16x128xi32> to vector<16x128xf32>
      %cst_18 = arith.constant -1.500000e+00 : f32
      %51 = vector.broadcast %cst_18 : f32 to vector<16x128xf32>
      %52 = arith.cmpf oge, %30, %51 : vector<16x128xf32>
      %53 = arith.extui %52 : vector<16x128xi1> to vector<16x128xi32>
      %54 = arith.sitofp %53 : vector<16x128xi32> to vector<16x128xf32>
      %cst_19 = arith.constant -0.899999976 : f32
      %55 = vector.broadcast %cst_19 : f32 to vector<16x128xf32>
      %56 = arith.cmpf oge, %30, %55 : vector<16x128xf32>
      %57 = arith.extui %56 : vector<16x128xi1> to vector<16x128xi32>
      %58 = arith.sitofp %57 : vector<16x128xi32> to vector<16x128xf32>
      %cst_20 = arith.constant -3.000000e-01 : f32
      %59 = vector.broadcast %cst_20 : f32 to vector<16x128xf32>
      %60 = arith.cmpf oge, %30, %59 : vector<16x128xf32>
      %61 = arith.extui %60 : vector<16x128xi1> to vector<16x128xi32>
      %62 = arith.sitofp %61 : vector<16x128xi32> to vector<16x128xf32>
      %cst_21 = arith.constant 3.000000e-01 : f32
      %63 = vector.broadcast %cst_21 : f32 to vector<16x128xf32>
      %64 = arith.cmpf oge, %30, %63 : vector<16x128xf32>
      %65 = arith.extui %64 : vector<16x128xi1> to vector<16x128xi32>
      %66 = arith.sitofp %65 : vector<16x128xi32> to vector<16x128xf32>
      %cst_22 = arith.constant 0.899999976 : f32
      %67 = vector.broadcast %cst_22 : f32 to vector<16x128xf32>
      %68 = arith.cmpf oge, %30, %67 : vector<16x128xf32>
      %69 = arith.extui %68 : vector<16x128xi1> to vector<16x128xi32>
      %70 = arith.sitofp %69 : vector<16x128xi32> to vector<16x128xf32>
      %cst_23 = arith.constant 1.500000e+00 : f32
      %71 = vector.broadcast %cst_23 : f32 to vector<16x128xf32>
      %72 = arith.cmpf oge, %30, %71 : vector<16x128xf32>
      %73 = arith.extui %72 : vector<16x128xi1> to vector<16x128xi32>
      %74 = arith.sitofp %73 : vector<16x128xi32> to vector<16x128xf32>
      %cst_24 = arith.constant 2.100000e+00 : f32
      %75 = vector.broadcast %cst_24 : f32 to vector<16x128xf32>
      %76 = arith.cmpf oge, %30, %75 : vector<16x128xf32>
      %77 = arith.extui %76 : vector<16x128xi1> to vector<16x128xi32>
      %78 = arith.sitofp %77 : vector<16x128xi32> to vector<16x128xf32>
      %cst_25 = arith.constant 2.700000e+00 : f32
      %79 = vector.broadcast %cst_25 : f32 to vector<16x128xf32>
      %80 = arith.cmpf oge, %30, %79 : vector<16x128xf32>
      %81 = arith.extui %80 : vector<16x128xi1> to vector<16x128xi32>
      %82 = arith.sitofp %81 : vector<16x128xi32> to vector<16x128xf32>
      %cst_26 = arith.constant 3.300000e+00 : f32
      %83 = vector.broadcast %cst_26 : f32 to vector<16x128xf32>
      %84 = arith.cmpf oge, %30, %83 : vector<16x128xf32>
      %85 = arith.extui %84 : vector<16x128xi1> to vector<16x128xi32>
      %86 = arith.sitofp %85 : vector<16x128xi32> to vector<16x128xf32>
      %87 = arith.subf %42, %46 : vector<16x128xf32>
      %88 = arith.subf %46, %50 : vector<16x128xf32>
      %89 = arith.subf %50, %54 : vector<16x128xf32>
      %90 = arith.subf %54, %58 : vector<16x128xf32>
      %91 = arith.subf %58, %62 : vector<16x128xf32>
      %92 = arith.subf %62, %66 : vector<16x128xf32>
      %93 = arith.subf %66, %70 : vector<16x128xf32>
      %94 = arith.subf %70, %74 : vector<16x128xf32>
      %95 = arith.subf %74, %78 : vector<16x128xf32>
      %96 = arith.subf %78, %82 : vector<16x128xf32>
      %97 = arith.subf %82, %86 : vector<16x128xf32>
      %cst_27 = arith.constant -3.300000e+00 : f32
      %98 = vector.broadcast %cst_27 : f32 to vector<16x128xf32>
      %99 = arith.subf %30, %98 : vector<16x128xf32>
      %cst_28 = arith.constant 1.66666663 : f32
      %100 = vector.broadcast %cst_28 : f32 to vector<16x128xf32>
      %101 = arith.mulf %99, %100 : vector<16x128xf32>
      %cst_29 = arith.constant 1.000000e+00 : f32
      %102 = vector.broadcast %cst_29 : f32 to vector<16x128xf32>
      %103 = arith.subf %101, %102 : vector<16x128xf32>
      %104 = arith.mulf %101, %87 : vector<16x128xf32>
      %cst_30 = arith.constant 1.000000e+00 : f32
      %105 = vector.broadcast %cst_30 : f32 to vector<16x128xf32>
      %106 = arith.subf %105, %103 : vector<16x128xf32>
      %107 = arith.mulf %106, %88 : vector<16x128xf32>
      %108 = arith.addf %104, %107 : vector<16x128xf32>
      %cst_31 = arith.constant 1.000000e+00 : f32
      %109 = vector.broadcast %cst_31 : f32 to vector<16x128xf32>
      %110 = arith.subf %103, %109 : vector<16x128xf32>
      %111 = arith.mulf %103, %88 : vector<16x128xf32>
      %cst_32 = arith.constant 1.000000e+00 : f32
      %112 = vector.broadcast %cst_32 : f32 to vector<16x128xf32>
      %113 = arith.subf %112, %110 : vector<16x128xf32>
      %114 = arith.mulf %113, %89 : vector<16x128xf32>
      %115 = arith.addf %111, %114 : vector<16x128xf32>
      %cst_33 = arith.constant 1.000000e+00 : f32
      %116 = vector.broadcast %cst_33 : f32 to vector<16x128xf32>
      %117 = arith.subf %110, %116 : vector<16x128xf32>
      %118 = arith.mulf %110, %89 : vector<16x128xf32>
      %cst_34 = arith.constant 1.000000e+00 : f32
      %119 = vector.broadcast %cst_34 : f32 to vector<16x128xf32>
      %120 = arith.subf %119, %117 : vector<16x128xf32>
      %121 = arith.mulf %120, %90 : vector<16x128xf32>
      %122 = arith.addf %118, %121 : vector<16x128xf32>
      %cst_35 = arith.constant 1.000000e+00 : f32
      %123 = vector.broadcast %cst_35 : f32 to vector<16x128xf32>
      %124 = arith.subf %117, %123 : vector<16x128xf32>
      %125 = arith.mulf %117, %90 : vector<16x128xf32>
      %cst_36 = arith.constant 1.000000e+00 : f32
      %126 = vector.broadcast %cst_36 : f32 to vector<16x128xf32>
      %127 = arith.subf %126, %124 : vector<16x128xf32>
      %128 = arith.mulf %127, %91 : vector<16x128xf32>
      %129 = arith.addf %125, %128 : vector<16x128xf32>
      %cst_37 = arith.constant 1.000000e+00 : f32
      %130 = vector.broadcast %cst_37 : f32 to vector<16x128xf32>
      %131 = arith.subf %124, %130 : vector<16x128xf32>
      %132 = arith.mulf %124, %91 : vector<16x128xf32>
      %cst_38 = arith.constant 1.000000e+00 : f32
      %133 = vector.broadcast %cst_38 : f32 to vector<16x128xf32>
      %134 = arith.subf %133, %131 : vector<16x128xf32>
      %135 = arith.mulf %134, %92 : vector<16x128xf32>
      %136 = arith.addf %132, %135 : vector<16x128xf32>
      %cst_39 = arith.constant 1.000000e+00 : f32
      %137 = vector.broadcast %cst_39 : f32 to vector<16x128xf32>
      %138 = arith.subf %131, %137 : vector<16x128xf32>
      %139 = arith.mulf %131, %92 : vector<16x128xf32>
      %cst_40 = arith.constant 1.000000e+00 : f32
      %140 = vector.broadcast %cst_40 : f32 to vector<16x128xf32>
      %141 = arith.subf %140, %138 : vector<16x128xf32>
      %142 = arith.mulf %141, %93 : vector<16x128xf32>
      %143 = arith.addf %139, %142 : vector<16x128xf32>
      %cst_41 = arith.constant 1.000000e+00 : f32
      %144 = vector.broadcast %cst_41 : f32 to vector<16x128xf32>
      %145 = arith.subf %138, %144 : vector<16x128xf32>
      %146 = arith.mulf %138, %93 : vector<16x128xf32>
      %cst_42 = arith.constant 1.000000e+00 : f32
      %147 = vector.broadcast %cst_42 : f32 to vector<16x128xf32>
      %148 = arith.subf %147, %145 : vector<16x128xf32>
      %149 = arith.mulf %148, %94 : vector<16x128xf32>
      %150 = arith.addf %146, %149 : vector<16x128xf32>
      %cst_43 = arith.constant 1.000000e+00 : f32
      %151 = vector.broadcast %cst_43 : f32 to vector<16x128xf32>
      %152 = arith.subf %145, %151 : vector<16x128xf32>
      %153 = arith.mulf %145, %94 : vector<16x128xf32>
      %cst_44 = arith.constant 1.000000e+00 : f32
      %154 = vector.broadcast %cst_44 : f32 to vector<16x128xf32>
      %155 = arith.subf %154, %152 : vector<16x128xf32>
      %156 = arith.mulf %155, %95 : vector<16x128xf32>
      %157 = arith.addf %153, %156 : vector<16x128xf32>
      %cst_45 = arith.constant 1.000000e+00 : f32
      %158 = vector.broadcast %cst_45 : f32 to vector<16x128xf32>
      %159 = arith.subf %152, %158 : vector<16x128xf32>
      %160 = arith.mulf %152, %95 : vector<16x128xf32>
      %cst_46 = arith.constant 1.000000e+00 : f32
      %161 = vector.broadcast %cst_46 : f32 to vector<16x128xf32>
      %162 = arith.subf %161, %159 : vector<16x128xf32>
      %163 = arith.mulf %162, %96 : vector<16x128xf32>
      %164 = arith.addf %160, %163 : vector<16x128xf32>
      %cst_47 = arith.constant 1.000000e+00 : f32
      %165 = vector.broadcast %cst_47 : f32 to vector<16x128xf32>
      %166 = arith.subf %159, %165 : vector<16x128xf32>
      %167 = arith.mulf %159, %96 : vector<16x128xf32>
      %cst_48 = arith.constant 1.000000e+00 : f32
      %168 = vector.broadcast %cst_48 : f32 to vector<16x128xf32>
      %169 = arith.subf %168, %166 : vector<16x128xf32>
      %170 = arith.mulf %169, %97 : vector<16x128xf32>
      %171 = arith.addf %167, %170 : vector<16x128xf32>
      %cst_49 = arith.constant -3.300000e+00 : f32
      %172 = vector.broadcast %cst_49 : f32 to vector<16x128xf32>
      %173 = arith.subf %30, %172 : vector<16x128xf32>
      %cst_50 = arith.constant 0.833333313 : f32
      %174 = vector.broadcast %cst_50 : f32 to vector<16x128xf32>
      %175 = arith.mulf %173, %174 : vector<16x128xf32>
      %cst_51 = arith.constant 5.000000e-01 : f32
      %176 = vector.broadcast %cst_51 : f32 to vector<16x128xf32>
      %177 = arith.subf %175, %176 : vector<16x128xf32>
      %178 = arith.mulf %175, %108 : vector<16x128xf32>
      %cst_52 = arith.constant 1.000000e+00 : f32
      %179 = vector.broadcast %cst_52 : f32 to vector<16x128xf32>
      %180 = arith.subf %179, %177 : vector<16x128xf32>
      %181 = arith.mulf %180, %115 : vector<16x128xf32>
      %182 = arith.addf %178, %181 : vector<16x128xf32>
      %cst_53 = arith.constant 5.000000e-01 : f32
      %183 = vector.broadcast %cst_53 : f32 to vector<16x128xf32>
      %184 = arith.subf %177, %183 : vector<16x128xf32>
      %185 = arith.mulf %177, %115 : vector<16x128xf32>
      %cst_54 = arith.constant 1.000000e+00 : f32
      %186 = vector.broadcast %cst_54 : f32 to vector<16x128xf32>
      %187 = arith.subf %186, %184 : vector<16x128xf32>
      %188 = arith.mulf %187, %122 : vector<16x128xf32>
      %189 = arith.addf %185, %188 : vector<16x128xf32>
      %cst_55 = arith.constant 5.000000e-01 : f32
      %190 = vector.broadcast %cst_55 : f32 to vector<16x128xf32>
      %191 = arith.subf %184, %190 : vector<16x128xf32>
      %192 = arith.mulf %184, %122 : vector<16x128xf32>
      %cst_56 = arith.constant 1.000000e+00 : f32
      %193 = vector.broadcast %cst_56 : f32 to vector<16x128xf32>
      %194 = arith.subf %193, %191 : vector<16x128xf32>
      %195 = arith.mulf %194, %129 : vector<16x128xf32>
      %196 = arith.addf %192, %195 : vector<16x128xf32>
      %cst_57 = arith.constant 5.000000e-01 : f32
      %197 = vector.broadcast %cst_57 : f32 to vector<16x128xf32>
      %198 = arith.subf %191, %197 : vector<16x128xf32>
      %199 = arith.mulf %191, %129 : vector<16x128xf32>
      %cst_58 = arith.constant 1.000000e+00 : f32
      %200 = vector.broadcast %cst_58 : f32 to vector<16x128xf32>
      %201 = arith.subf %200, %198 : vector<16x128xf32>
      %202 = arith.mulf %201, %136 : vector<16x128xf32>
      %203 = arith.addf %199, %202 : vector<16x128xf32>
      %cst_59 = arith.constant 5.000000e-01 : f32
      %204 = vector.broadcast %cst_59 : f32 to vector<16x128xf32>
      %205 = arith.subf %198, %204 : vector<16x128xf32>
      %206 = arith.mulf %198, %136 : vector<16x128xf32>
      %cst_60 = arith.constant 1.000000e+00 : f32
      %207 = vector.broadcast %cst_60 : f32 to vector<16x128xf32>
      %208 = arith.subf %207, %205 : vector<16x128xf32>
      %209 = arith.mulf %208, %143 : vector<16x128xf32>
      %210 = arith.addf %206, %209 : vector<16x128xf32>
      %cst_61 = arith.constant 5.000000e-01 : f32
      %211 = vector.broadcast %cst_61 : f32 to vector<16x128xf32>
      %212 = arith.subf %205, %211 : vector<16x128xf32>
      %213 = arith.mulf %205, %143 : vector<16x128xf32>
      %cst_62 = arith.constant 1.000000e+00 : f32
      %214 = vector.broadcast %cst_62 : f32 to vector<16x128xf32>
      %215 = arith.subf %214, %212 : vector<16x128xf32>
      %216 = arith.mulf %215, %150 : vector<16x128xf32>
      %217 = arith.addf %213, %216 : vector<16x128xf32>
      %cst_63 = arith.constant 5.000000e-01 : f32
      %218 = vector.broadcast %cst_63 : f32 to vector<16x128xf32>
      %219 = arith.subf %212, %218 : vector<16x128xf32>
      %220 = arith.mulf %212, %150 : vector<16x128xf32>
      %cst_64 = arith.constant 1.000000e+00 : f32
      %221 = vector.broadcast %cst_64 : f32 to vector<16x128xf32>
      %222 = arith.subf %221, %219 : vector<16x128xf32>
      %223 = arith.mulf %222, %157 : vector<16x128xf32>
      %224 = arith.addf %220, %223 : vector<16x128xf32>
      %cst_65 = arith.constant 5.000000e-01 : f32
      %225 = vector.broadcast %cst_65 : f32 to vector<16x128xf32>
      %226 = arith.subf %219, %225 : vector<16x128xf32>
      %227 = arith.mulf %219, %157 : vector<16x128xf32>
      %cst_66 = arith.constant 1.000000e+00 : f32
      %228 = vector.broadcast %cst_66 : f32 to vector<16x128xf32>
      %229 = arith.subf %228, %226 : vector<16x128xf32>
      %230 = arith.mulf %229, %164 : vector<16x128xf32>
      %231 = arith.addf %227, %230 : vector<16x128xf32>
      %cst_67 = arith.constant 5.000000e-01 : f32
      %232 = vector.broadcast %cst_67 : f32 to vector<16x128xf32>
      %233 = arith.subf %226, %232 : vector<16x128xf32>
      %234 = arith.mulf %226, %164 : vector<16x128xf32>
      %cst_68 = arith.constant 1.000000e+00 : f32
      %235 = vector.broadcast %cst_68 : f32 to vector<16x128xf32>
      %236 = arith.subf %235, %233 : vector<16x128xf32>
      %237 = arith.mulf %236, %171 : vector<16x128xf32>
      %238 = arith.addf %234, %237 : vector<16x128xf32>
      %cst_69 = arith.constant -3.300000e+00 : f32
      %239 = vector.broadcast %cst_69 : f32 to vector<16x128xf32>
      %240 = arith.subf %30, %239 : vector<16x128xf32>
      %cst_70 = arith.constant 0.555555582 : f32
      %241 = vector.broadcast %cst_70 : f32 to vector<16x128xf32>
      %242 = arith.mulf %240, %241 : vector<16x128xf32>
      %cst_71 = arith.constant 0.333333343 : f32
      %243 = vector.broadcast %cst_71 : f32 to vector<16x128xf32>
      %244 = arith.subf %242, %243 : vector<16x128xf32>
      %245 = arith.mulf %242, %182 : vector<16x128xf32>
      %cst_72 = arith.constant 1.000000e+00 : f32
      %246 = vector.broadcast %cst_72 : f32 to vector<16x128xf32>
      %247 = arith.subf %246, %244 : vector<16x128xf32>
      %248 = arith.mulf %247, %189 : vector<16x128xf32>
      %249 = arith.addf %245, %248 : vector<16x128xf32>
      %cst_73 = arith.constant 0.333333343 : f32
      %250 = vector.broadcast %cst_73 : f32 to vector<16x128xf32>
      %251 = arith.subf %244, %250 : vector<16x128xf32>
      %252 = arith.mulf %244, %189 : vector<16x128xf32>
      %cst_74 = arith.constant 1.000000e+00 : f32
      %253 = vector.broadcast %cst_74 : f32 to vector<16x128xf32>
      %254 = arith.subf %253, %251 : vector<16x128xf32>
      %255 = arith.mulf %254, %196 : vector<16x128xf32>
      %256 = arith.addf %252, %255 : vector<16x128xf32>
      %cst_75 = arith.constant 0.333333343 : f32
      %257 = vector.broadcast %cst_75 : f32 to vector<16x128xf32>
      %258 = arith.subf %251, %257 : vector<16x128xf32>
      %259 = arith.mulf %251, %196 : vector<16x128xf32>
      %cst_76 = arith.constant 1.000000e+00 : f32
      %260 = vector.broadcast %cst_76 : f32 to vector<16x128xf32>
      %261 = arith.subf %260, %258 : vector<16x128xf32>
      %262 = arith.mulf %261, %203 : vector<16x128xf32>
      %263 = arith.addf %259, %262 : vector<16x128xf32>
      %cst_77 = arith.constant 0.333333343 : f32
      %264 = vector.broadcast %cst_77 : f32 to vector<16x128xf32>
      %265 = arith.subf %258, %264 : vector<16x128xf32>
      %266 = arith.mulf %258, %203 : vector<16x128xf32>
      %cst_78 = arith.constant 1.000000e+00 : f32
      %267 = vector.broadcast %cst_78 : f32 to vector<16x128xf32>
      %268 = arith.subf %267, %265 : vector<16x128xf32>
      %269 = arith.mulf %268, %210 : vector<16x128xf32>
      %270 = arith.addf %266, %269 : vector<16x128xf32>
      %cst_79 = arith.constant 0.333333343 : f32
      %271 = vector.broadcast %cst_79 : f32 to vector<16x128xf32>
      %272 = arith.subf %265, %271 : vector<16x128xf32>
      %273 = arith.mulf %265, %210 : vector<16x128xf32>
      %cst_80 = arith.constant 1.000000e+00 : f32
      %274 = vector.broadcast %cst_80 : f32 to vector<16x128xf32>
      %275 = arith.subf %274, %272 : vector<16x128xf32>
      %276 = arith.mulf %275, %217 : vector<16x128xf32>
      %277 = arith.addf %273, %276 : vector<16x128xf32>
      %cst_81 = arith.constant 0.333333343 : f32
      %278 = vector.broadcast %cst_81 : f32 to vector<16x128xf32>
      %279 = arith.subf %272, %278 : vector<16x128xf32>
      %280 = arith.mulf %272, %217 : vector<16x128xf32>
      %cst_82 = arith.constant 1.000000e+00 : f32
      %281 = vector.broadcast %cst_82 : f32 to vector<16x128xf32>
      %282 = arith.subf %281, %279 : vector<16x128xf32>
      %283 = arith.mulf %282, %224 : vector<16x128xf32>
      %284 = arith.addf %280, %283 : vector<16x128xf32>
      %cst_83 = arith.constant 0.333333343 : f32
      %285 = vector.broadcast %cst_83 : f32 to vector<16x128xf32>
      %286 = arith.subf %279, %285 : vector<16x128xf32>
      %287 = arith.mulf %279, %224 : vector<16x128xf32>
      %cst_84 = arith.constant 1.000000e+00 : f32
      %288 = vector.broadcast %cst_84 : f32 to vector<16x128xf32>
      %289 = arith.subf %288, %286 : vector<16x128xf32>
      %290 = arith.mulf %289, %231 : vector<16x128xf32>
      %291 = arith.addf %287, %290 : vector<16x128xf32>
      %cst_85 = arith.constant 0.333333343 : f32
      %292 = vector.broadcast %cst_85 : f32 to vector<16x128xf32>
      %293 = arith.subf %286, %292 : vector<16x128xf32>
      %294 = arith.mulf %286, %231 : vector<16x128xf32>
      %cst_86 = arith.constant 1.000000e+00 : f32
      %295 = vector.broadcast %cst_86 : f32 to vector<16x128xf32>
      %296 = arith.subf %295, %293 : vector<16x128xf32>
      %297 = arith.mulf %296, %238 : vector<16x128xf32>
      %298 = arith.addf %294, %297 : vector<16x128xf32>
      %cst_87 = arith.constant -1.500000e+00 : f32
      %299 = vector.broadcast %cst_87 : f32 to vector<16x128xf32>
      %300 = arith.subf %30, %299 : vector<16x128xf32>
      %cst_88 = arith.constant 2.33333325 : f32
      %301 = vector.broadcast %cst_88 : f32 to vector<16x128xf32>
      %302 = arith.mulf %300, %301 : vector<16x128xf32>
      %303 = arith.mulf %302, %302 : vector<16x128xf32>
      %cst_89 = arith.constant 0.000000e+00 : f32
      %304 = vector.broadcast %cst_89 : f32 to vector<16x128xf32>
      %305 = arith.subf %304, %303 : vector<16x128xf32>
      %306 = math.exp %305 : vector<16x128xf32>
      %307 = arith.addf %249, %306 : vector<16x128xf32>
      %c128 = arith.constant 128 : index
      %c0_90 = arith.constant 0 : index
      %308 = vector.load %arg4[%c128, %c0_90] : memref<1152x128xf32, #tpu.memory_space<vmem>>, vector<128x128xf32>
      %cst_91 = arith.constant dense<0.000000e+00> : vector<16x128xf32>
      %309 = tpu.matmul %307, %308, %cst_91 {dimension_numbers = #tpu.dot_dimension_numbers<[1], [0], [0], [1], [0, 0, 1, 1], [], []>} : vector<16x128xf32>, vector<128x128xf32>, vector<16x128xf32> -> vector<16x128xf32>
      %310 = arith.addf %38, %309 : vector<16x128xf32>
      %cst_92 = arith.constant -1.07142854 : f32
      %311 = vector.broadcast %cst_92 : f32 to vector<16x128xf32>
      %312 = arith.subf %30, %311 : vector<16x128xf32>
      %cst_93 = arith.constant 2.33333325 : f32
      %313 = vector.broadcast %cst_93 : f32 to vector<16x128xf32>
      %314 = arith.mulf %312, %313 : vector<16x128xf32>
      %315 = arith.mulf %314, %314 : vector<16x128xf32>
      %cst_94 = arith.constant 0.000000e+00 : f32
      %316 = vector.broadcast %cst_94 : f32 to vector<16x128xf32>
      %317 = arith.subf %316, %315 : vector<16x128xf32>
      %318 = math.exp %317 : vector<16x128xf32>
      %319 = arith.addf %256, %318 : vector<16x128xf32>
      %c256 = arith.constant 256 : index
      %c0_95 = arith.constant 0 : index
      %320 = vector.load %arg4[%c256, %c0_95] : memref<1152x128xf32, #tpu.memory_space<vmem>>, vector<128x128xf32>
      %cst_96 = arith.constant dense<0.000000e+00> : vector<16x128xf32>
      %321 = tpu.matmul %319, %320, %cst_96 {dimension_numbers = #tpu.dot_dimension_numbers<[1], [0], [0], [1], [0, 0, 1, 1], [], []>} : vector<16x128xf32>, vector<128x128xf32>, vector<16x128xf32> -> vector<16x128xf32>
      %322 = arith.addf %310, %321 : vector<16x128xf32>
      %cst_97 = arith.constant -0.642857134 : f32
      %323 = vector.broadcast %cst_97 : f32 to vector<16x128xf32>
      %324 = arith.subf %30, %323 : vector<16x128xf32>
      %cst_98 = arith.constant 2.33333325 : f32
      %325 = vector.broadcast %cst_98 : f32 to vector<16x128xf32>
      %326 = arith.mulf %324, %325 : vector<16x128xf32>
      %327 = arith.mulf %326, %326 : vector<16x128xf32>
      %cst_99 = arith.constant 0.000000e+00 : f32
      %328 = vector.broadcast %cst_99 : f32 to vector<16x128xf32>
      %329 = arith.subf %328, %327 : vector<16x128xf32>
      %330 = math.exp %329 : vector<16x128xf32>
      %331 = arith.addf %263, %330 : vector<16x128xf32>
      %c384 = arith.constant 384 : index
      %c0_100 = arith.constant 0 : index
      %332 = vector.load %arg4[%c384, %c0_100] : memref<1152x128xf32, #tpu.memory_space<vmem>>, vector<128x128xf32>
      %cst_101 = arith.constant dense<0.000000e+00> : vector<16x128xf32>
      %333 = tpu.matmul %331, %332, %cst_101 {dimension_numbers = #tpu.dot_dimension_numbers<[1], [0], [0], [1], [0, 0, 1, 1], [], []>} : vector<16x128xf32>, vector<128x128xf32>, vector<16x128xf32> -> vector<16x128xf32>
      %334 = arith.addf %322, %333 : vector<16x128xf32>
      %cst_102 = arith.constant -0.214285716 : f32
      %335 = vector.broadcast %cst_102 : f32 to vector<16x128xf32>
      %336 = arith.subf %30, %335 : vector<16x128xf32>
      %cst_103 = arith.constant 2.33333325 : f32
      %337 = vector.broadcast %cst_103 : f32 to vector<16x128xf32>
      %338 = arith.mulf %336, %337 : vector<16x128xf32>
      %339 = arith.mulf %338, %338 : vector<16x128xf32>
      %cst_104 = arith.constant 0.000000e+00 : f32
      %340 = vector.broadcast %cst_104 : f32 to vector<16x128xf32>
      %341 = arith.subf %340, %339 : vector<16x128xf32>
      %342 = math.exp %341 : vector<16x128xf32>
      %343 = arith.addf %270, %342 : vector<16x128xf32>
      %c512 = arith.constant 512 : index
      %c0_105 = arith.constant 0 : index
      %344 = vector.load %arg4[%c512, %c0_105] : memref<1152x128xf32, #tpu.memory_space<vmem>>, vector<128x128xf32>
      %cst_106 = arith.constant dense<0.000000e+00> : vector<16x128xf32>
      %345 = tpu.matmul %343, %344, %cst_106 {dimension_numbers = #tpu.dot_dimension_numbers<[1], [0], [0], [1], [0, 0, 1, 1], [], []>} : vector<16x128xf32>, vector<128x128xf32>, vector<16x128xf32> -> vector<16x128xf32>
      %346 = arith.addf %334, %345 : vector<16x128xf32>
      %cst_107 = arith.constant 0.214285716 : f32
      %347 = vector.broadcast %cst_107 : f32 to vector<16x128xf32>
      %348 = arith.subf %30, %347 : vector<16x128xf32>
      %cst_108 = arith.constant 2.33333325 : f32
      %349 = vector.broadcast %cst_108 : f32 to vector<16x128xf32>
      %350 = arith.mulf %348, %349 : vector<16x128xf32>
      %351 = arith.mulf %350, %350 : vector<16x128xf32>
      %cst_109 = arith.constant 0.000000e+00 : f32
      %352 = vector.broadcast %cst_109 : f32 to vector<16x128xf32>
      %353 = arith.subf %352, %351 : vector<16x128xf32>
      %354 = math.exp %353 : vector<16x128xf32>
      %355 = arith.addf %277, %354 : vector<16x128xf32>
      %c640 = arith.constant 640 : index
      %c0_110 = arith.constant 0 : index
      %356 = vector.load %arg4[%c640, %c0_110] : memref<1152x128xf32, #tpu.memory_space<vmem>>, vector<128x128xf32>
      %cst_111 = arith.constant dense<0.000000e+00> : vector<16x128xf32>
      %357 = tpu.matmul %355, %356, %cst_111 {dimension_numbers = #tpu.dot_dimension_numbers<[1], [0], [0], [1], [0, 0, 1, 1], [], []>} : vector<16x128xf32>, vector<128x128xf32>, vector<16x128xf32> -> vector<16x128xf32>
      %358 = arith.addf %346, %357 : vector<16x128xf32>
      %cst_112 = arith.constant 0.642857134 : f32
      %359 = vector.broadcast %cst_112 : f32 to vector<16x128xf32>
      %360 = arith.subf %30, %359 : vector<16x128xf32>
      %cst_113 = arith.constant 2.33333325 : f32
      %361 = vector.broadcast %cst_113 : f32 to vector<16x128xf32>
      %362 = arith.mulf %360, %361 : vector<16x128xf32>
      %363 = arith.mulf %362, %362 : vector<16x128xf32>
      %cst_114 = arith.constant 0.000000e+00 : f32
      %364 = vector.broadcast %cst_114 : f32 to vector<16x128xf32>
      %365 = arith.subf %364, %363 : vector<16x128xf32>
      %366 = math.exp %365 : vector<16x128xf32>
      %367 = arith.addf %284, %366 : vector<16x128xf32>
      %c768 = arith.constant 768 : index
      %c0_115 = arith.constant 0 : index
      %368 = vector.load %arg4[%c768, %c0_115] : memref<1152x128xf32, #tpu.memory_space<vmem>>, vector<128x128xf32>
      %cst_116 = arith.constant dense<0.000000e+00> : vector<16x128xf32>
      %369 = tpu.matmul %367, %368, %cst_116 {dimension_numbers = #tpu.dot_dimension_numbers<[1], [0], [0], [1], [0, 0, 1, 1], [], []>} : vector<16x128xf32>, vector<128x128xf32>, vector<16x128xf32> -> vector<16x128xf32>
      %370 = arith.addf %358, %369 : vector<16x128xf32>
      %cst_117 = arith.constant 1.07142854 : f32
      %371 = vector.broadcast %cst_117 : f32 to vector<16x128xf32>
      %372 = arith.subf %30, %371 : vector<16x128xf32>
      %cst_118 = arith.constant 2.33333325 : f32
      %373 = vector.broadcast %cst_118 : f32 to vector<16x128xf32>
      %374 = arith.mulf %372, %373 : vector<16x128xf32>
      %375 = arith.mulf %374, %374 : vector<16x128xf32>
      %cst_119 = arith.constant 0.000000e+00 : f32
      %376 = vector.broadcast %cst_119 : f32 to vector<16x128xf32>
      %377 = arith.subf %376, %375 : vector<16x128xf32>
      %378 = math.exp %377 : vector<16x128xf32>
      %379 = arith.addf %291, %378 : vector<16x128xf32>
      %c896 = arith.constant 896 : index
      %c0_120 = arith.constant 0 : index
      %380 = vector.load %arg4[%c896, %c0_120] : memref<1152x128xf32, #tpu.memory_space<vmem>>, vector<128x128xf32>
      %cst_121 = arith.constant dense<0.000000e+00> : vector<16x128xf32>
      %381 = tpu.matmul %379, %380, %cst_121 {dimension_numbers = #tpu.dot_dimension_numbers<[1], [0], [0], [1], [0, 0, 1, 1], [], []>} : vector<16x128xf32>, vector<128x128xf32>, vector<16x128xf32> -> vector<16x128xf32>
      %382 = arith.addf %370, %381 : vector<16x128xf32>
      %cst_122 = arith.constant 1.500000e+00 : f32
      %383 = vector.broadcast %cst_122 : f32 to vector<16x128xf32>
      %384 = arith.subf %30, %383 : vector<16x128xf32>
      %cst_123 = arith.constant 2.33333325 : f32
      %385 = vector.broadcast %cst_123 : f32 to vector<16x128xf32>
      %386 = arith.mulf %384, %385 : vector<16x128xf32>
      %387 = arith.mulf %386, %386 : vector<16x128xf32>
      %cst_124 = arith.constant 0.000000e+00 : f32
      %388 = vector.broadcast %cst_124 : f32 to vector<16x128xf32>
      %389 = arith.subf %388, %387 : vector<16x128xf32>
      %390 = math.exp %389 : vector<16x128xf32>
      %391 = arith.addf %298, %390 : vector<16x128xf32>
      %c1024 = arith.constant 1024 : index
      %c0_125 = arith.constant 0 : index
      %392 = vector.load %arg4[%c1024, %c0_125] : memref<1152x128xf32, #tpu.memory_space<vmem>>, vector<128x128xf32>
      %cst_126 = arith.constant dense<0.000000e+00> : vector<16x128xf32>
      %393 = tpu.matmul %391, %392, %cst_126 {dimension_numbers = #tpu.dot_dimension_numbers<[1], [0], [0], [1], [0, 0, 1, 1], [], []>} : vector<16x128xf32>, vector<128x128xf32>, vector<16x128xf32> -> vector<16x128xf32>
      %394 = arith.addf %382, %393 : vector<16x128xf32>
      %395 = arith.index_cast %10 : i32 to index
      %c0_127 = arith.constant 0 : index
      %396 = vector.load %arg5[%395, %c0_127] : memref<128x128xf32, #tpu.memory_space<vmem>>, vector<16x128xf32>
      tpu.vector_store %arg5[%395, %c0_127], %394 {strides = array<i32>} : memref<128x128xf32, #tpu.memory_space<vmem>>, vector<16x128xf32>,
    }
    %c8_i32_3 = arith.constant 8 : i32
    return
  }
  func.func @transform_0(%arg0: i32) -> (i32, i32) {
    %c0_i32 = arith.constant 0 : i32
    %c0_i32_0 = arith.constant 0 : i32
    return %arg0, %c0_i32 : i32, i32
  }
  func.func @transform_1(%arg0: i32) -> (i32, i32) {
    %c0_i32 = arith.constant 0 : i32
    %c0_i32_0 = arith.constant 0 : i32
    %c0_i32_1 = arith.constant 0 : i32
    return %c0_i32, %c0_i32_0 : i32, i32
  }
  func.func @transform_2(%arg0: i32) -> (i32, i32) {
    %c0_i32 = arith.constant 0 : i32
    %c0_i32_0 = arith.constant 0 : i32
    %c0_i32_1 = arith.constant 0 : i32
    return %c0_i32, %c0_i32_0 : i32, i32
  }
  func.func @transform_3(%arg0: i32) -> (i32, i32) {
    %c0_i32 = arith.constant 0 : i32
    %c0_i32_0 = arith.constant 0 : i32
    %c0_i32_1 = arith.constant 0 : i32
    return %c0_i32, %c0_i32_0 : i32, i32
  }
  func.func @transform_4(%arg0: i32) -> (i32, i32) {
    %c0_i32 = arith.constant 0 : i32
    %c0_i32_0 = arith.constant 0 : i32
    return %arg0, %c0_i32 : i32, i32
  }
}

</mosaic_0001>

<llo_original>
// kernel: tpu_custom_call.1
$region0: #{tpu_custom_call.1}
  #allocation0 [shape = 'u32[]', space=smem, size = 0x4, offset = 0x4, fixed_abs, tag = 'smem constant byte address 0x4 - core index']
  #allocation1 [shape = 'u32[72,128]{1,0:T(1,128)}', space=vmem, size = 0x9000, scoped, tag = 'internal scratch']
  %s0 = inlined_call_operand.hbm [shape: f32[256,128], index: 0, kind: input, shape index: {}]
  %s1 = inlined_call_operand.hbm [shape: f32[1,128], index: 1, kind: input, shape index: {}]
  %s2 = inlined_call_operand.vmem [shape: f32[1,128], index: 2, kind: input, shape index: {}]
  %s3 = inlined_call_operand.hbm [shape: f32[1152,128], index: 3, kind: input, shape index: {}]
  %s4 = inlined_call_operand.hbm [shape: f32[256,128], index: 4, kind: output, shape index: {}]
  %s5 = sld [smem:[#allocation0]]
  $region68: #{tpu_custom_call.1} parent=0
    _
  %s7 = ssub.s32 1, %s5
  %s8 = scalar_select 0, %s7, %s5
  $region1: #{tpu_custom_call.1} parent=0
    #allocation2 [shape = 'u8[131072]{0}', space=vmem, size = 0x20000, scoped, tag = 'input window, operand 0']
    #allocation3 [shape = 's32[2]{0}', space=sflag, size = 0x8, scoped, tag = 'scoped memory for tpu_custom_call.1']
    #allocation4 [shape = 's32[2]{0}', space=sflag, size = 0x8, scoped, tag = 'scoped memory for tpu_custom_call.1']
    #allocation5 [shape = 'u8[512]{0}', space=vmem, size = 0x400, scoped, tag = 'input window, operand 1, single buffered']
    #allocation6 [shape = 's32[1]{0}', space=sflag, size = 0x4, scoped, tag = 'scoped memory for tpu_custom_call.1']
    #allocation7 [shape = 'u8[589824]{0}', space=vmem, size = 0x90000, scoped, tag = 'input window, operand 3, single buffered']
    #allocation8 [shape = 'u8[131072]{0}', space=vmem, size = 0x20000, scoped, tag = 'output window, operand 0']
    %9 = vsyncpa [#allocation3], 0
    %s10 = scalar_lea.sflag [#allocation3], 1
    %11 = vsyncpa %s10, 0
    %12 = vsyncpa [#allocation6], 0
    %13 = vsyncpa [#allocation4], 0
    %s14 = scalar_lea.sflag [#allocation4], 1
    %15 = vsyncpa %s14, 0
    loop: start=0, step=1, limit=4
    $region2: #{tpu_custom_call.1} parent=1 // loop_pre_header
      _
    $region3: #{tpu_custom_call.1} parent=1 // loop_header
      %s17 = sphi 0, %s21
      %p18 = scmp.ge.s32.totalorder %s17, 4
      %s27 = sphi 0, %s29
      %s30 = sphi 0, %s27
      %s31 = sphi 0, %s30
      %s47 = sphi 0, %s31
      %s51 = sphi 0, %s51
      %s53 = sphi 0, %s51
      %s54 = sphi 0, %s53
      %s68 = sphi 0, %s54
      %s72 = sphi 0, %s72
      %s74 = sphi 0, %s72
      %s75 = sphi 0, %s74
      %s89 = sphi 0, %s75
      %s93 = sphi 0, %s93
      %s95 = sphi 0, %s93
      %s96 = sphi 0, %s95
      %s110 = sphi 0, %s96
      %s116 = sphi 0, %s118
      %s119 = sphi 0, %s116
      %s120 = sphi 0, %s119
      %s136 = sphi 0, %s120
    $region4: #{tpu_custom_call.1} parent=1 // loop_header_branch
      %20 = sbr.rel (%p18) target = $region8
    $region5: #{tpu_custom_call.1} parent=1 // loop_body
      %s22 = ssub.s32 %s17, 1
      %s23 = ssub.s32 %s17, 2
      %s24 = sadd.s32 %s17, 1
      %s25 = ssub.s32 %s17, %s24
      %p26 = scmp.eq.s32.totalorder %s25, 0
      %s28 = sadd.s32 %s27, 1
      %s29 = scalar_select %p26, %s27, %s28
      %p32 = pneg %p26
      %p33 = scmp.eq.s32.totalorder %s17, 1
      %p34 = por %p32, %p33
      %p35 = scmp.ne.s32.totalorder %s27, %s30
      %p36 = scmp.eq.s32.totalorder %s17, 0
      %p37 = por %p35, %p36
      %p38 = scmp.ne.s32.totalorder %s27, %s30
      %p39 = scmp.eq.s32.totalorder %s22, 1
      %p40 = por %p38, %p39
      %p41 = scmp.ne.s32.totalorder %s30, %s31
      %p42 = scmp.eq.s32.totalorder %s22, 0
      %p43 = por %p41, %p42
      %p44 = scmp.ne.s32.totalorder %s30, %s31
      %p45 = scmp.eq.s32.totalorder %s23, 1
      %p46 = por %p44, %p45
      %p48 = scmp.ne.s32.totalorder %s31, %s47
      %p49 = scmp.eq.s32.totalorder %s23, 0
      %p50 = por %p48, %p49
      %s52 = sadd.s32 %s51, 1
      %p55 = scmp.eq.s32.totalorder %s17, 1
      %p56 = scmp.ne.s32.totalorder %s51, %s53
      %p57 = scmp.eq.s32.totalorder %s17, 0
      %p58 = por %p56, %p57
      %p59 = scmp.ne.s32.totalorder %s51, %s53
      %p60 = scmp.eq.s32.totalorder %s22, 1
      %p61 = por %p59, %p60
      %p62 = scmp.ne.s32.totalorder %s53, %s54
      %p63 = scmp.eq.s32.totalorder %s22, 0
      %p64 = por %p62, %p63
      %p65 = scmp.ne.s32.totalorder %s53, %s54
      %p66 = scmp.eq.s32.totalorder %s23, 1
      %p67 = por %p65, %p66
      %p69 = scmp.ne.s32.totalorder %s54, %s68
      %p70 = scmp.eq.s32.totalorder %s23, 0
      %p71 = por %p69, %p70
      %s73 = sadd.s32 %s72, 1
      %p76 = scmp.eq.s32.totalorder %s17, 1
      %p77 = scmp.ne.s32.totalorder %s72, %s74
      %p78 = scmp.eq.s32.totalorder %s17, 0
      %p79 = por %p77, %p78
      %p80 = scmp.ne.s32.totalorder %s72, %s74
      %p81 = scmp.eq.s32.totalorder %s22, 1
      %p82 = por %p80, %p81
      %p83 = scmp.ne.s32.totalorder %s74, %s75
      %p84 = scmp.eq.s32.totalorder %s22, 0
      %p85 = por %p83, %p84
      %p86 = scmp.ne.s32.totalorder %s74, %s75
      %p87 = scmp.eq.s32.totalorder %s23, 1
      %p88 = por %p86, %p87
      %p90 = scmp.ne.s32.totalorder %s75, %s89
      %p91 = scmp.eq.s32.totalorder %s23, 0
      %p92 = por %p90, %p91
      %s94 = sadd.s32 %s93, 1
      %p97 = scmp.eq.s32.totalorder %s17, 1
      %p98 = scmp.ne.s32.totalorder %s93, %s95
      %p99 = scmp.eq.s32.totalorder %s17, 0
      %p100 = por %p98, %p99
      %p101 = scmp.ne.s32.totalorder %s93, %s95
      %p102 = scmp.eq.s32.totalorder %s22, 1
      %p103 = por %p101, %p102
      %p104 = scmp.ne.s32.totalorder %s95, %s96
      %p105 = scmp.eq.s32.totalorder %s22, 0
      %p106 = por %p104, %p105
      %p107 = scmp.ne.s32.totalorder %s95, %s96
      %p108 = scmp.eq.s32.totalorder %s23, 1
      %p109 = por %p107, %p108
      %p111 = scmp.ne.s32.totalorder %s96, %s110
      %p112 = scmp.eq.s32.totalorder %s23, 0
      %p113 = por %p111, %p112
      %s114 = ssub.s32 %s17, %s24
      %p115 = scmp.eq.s32.totalorder %s114, 0
      %s117 = sadd.s32 %s116, 1
      %s118 = scalar_select %p115, %s116, %s117
      %p121 = pneg %p115
      %p122 = scmp.eq.s32.totalorder %s17, 1
      %p123 = por %p121, %p122
      %p124 = scmp.ne.s32.totalorder %s116, %s119
      %p125 = scmp.eq.s32.totalorder %s17, 0
      %p126 = por %p124, %p125
      %p127 = scmp.ne.s32.totalorder %s116, %s119
      %p128 = scmp.eq.s32.totalorder %s22, 1
      %p129 = por %p127, %p128
      %p130 = scmp.ne.s32.totalorder %s119, %s120
      %p131 = scmp.eq.s32.totalorder %s22, 0
      %p132 = por %p130, %p131
      %p133 = scmp.ne.s32.totalorder %s119, %s120
      %p134 = scmp.eq.s32.totalorder %s23, 1
      %p135 = por %p133, %p134
      %p137 = scmp.ne.s32.totalorder %s120, %s136
      %p138 = scmp.eq.s32.totalorder %s23, 0
      %p139 = por %p137, %p138
      %p140 = scmp.le.s32.totalorder 1, %s17
      %p141 = scmp.lt.s32.totalorder %s17, 3
      %p142 = pnand %p140, %p141
      %p143 = pneg %p142
      // Predicated region
      $region9: #{tpu_custom_call.1} parent=5 // pred_check
        _
      $region10: #{tpu_custom_call.1} parent=5 // pred_check_branch
        %145 = sbr.rel (%p142) target = $region12
      $region11: #{tpu_custom_call.1} parent=5 // pred_region
        %s146 = ssub.s32 %s17, 1
        // Predicated region
        $region13: #{tpu_custom_call.1} parent=11 // pred_check
          %p147 = pneg %p64
        $region14: #{tpu_custom_call.1} parent=11 // pred_check_branch
          %149 = sbr.rel (%p147) target = $region16
        $region15: #{tpu_custom_call.1} parent=11 // pred_region
          %151 = vsyncadd [#allocation6], 0
          %s153 = sshll.u32 %s1, 4
          %s154 = int_to_ptr.hbm [resolvable:$true] %s153
          %s155 = sshll.u32 [#allocation5], 4
          %s156 = int_to_ptr.vmem [resolvable:$true] %s155
          %158 = dma.hbm_to_vmem [thread:$0]  %s154, 16, %s156, [#allocation6]
        $region16: #{tpu_custom_call.1} parent=11 // pred_fallthru
          _
        // Predicated region
        $region17: #{tpu_custom_call.1} parent=11 // pred_check
          %p159 = pneg %p85
        $region18: #{tpu_custom_call.1} parent=11 // pred_check_branch
          %161 = sbr.rel (%p159) target = $region20
        $region19: #{tpu_custom_call.1} parent=11 // pred_region
          _
        $region20: #{tpu_custom_call.1} parent=11 // pred_fallthru
          _
        // Predicated region
        $region21: #{tpu_custom_call.1} parent=11 // pred_check
          %p162 = pneg %p106
        $region22: #{tpu_custom_call.1} parent=11 // pred_check_branch
          %164 = sbr.rel (%p162) target = $region24
        $region23: #{tpu_custom_call.1} parent=11 // pred_region
          %166 = vsyncadd [#allocation6], 0
          %s167 = sshll.u32 %s3, 4
          %s168 = int_to_ptr.hbm [resolvable:$true] %s167
          %s169 = sshll.u32 [#allocation7], 4
          %s170 = int_to_ptr.vmem [resolvable:$true] %s169
          %175 = dma.hbm_to_vmem [thread:$0]  %s168, 18432, %s170, [#allocation6], 128, 128, 8
        $region24: #{tpu_custom_call.1} parent=11 // pred_fallthru
          _
      $region12: #{tpu_custom_call.1} parent=5 // pred_fallthru
        _
      %p176 = scmp.lt.s32.totalorder %s17, 2
      // Predicated region
      $region25: #{tpu_custom_call.1} parent=5 // pred_check
        %p177 = pneg %p176
      $region26: #{tpu_custom_call.1} parent=5 // pred_check_branch
        %179 = sbr.rel (%p177) target = $region28
      $region27: #{tpu_custom_call.1} parent=5 // pred_region
        // Predicated region
        $region29: #{tpu_custom_call.1} parent=27 // pred_check
          %p180 = pneg %p37
        $region30: #{tpu_custom_call.1} parent=27 // pred_check_branch
          %182 = sbr.rel (%p180) target = $region32
        $region31: #{tpu_custom_call.1} parent=27 // pred_region
          %s183 = sand.u32 %s27, 1
          %s184 = scalar_lea.sflag [#allocation3], %s183
          %s185 = sand.u32 %s27, 1
          %s186 = smul.addr %s185, 128
          %s187 = scalar_lea.vmem [#allocation2], %s186
          %s188 = smul.u32 16, %s17
          %190 = vsyncadd %s184, 0
          %s191 = smul.addr %s188, 8
          %s192 = scalar_lea.hbm %s0, %s191
          %s193 = sshll.u32 %s192, 4
          %s194 = int_to_ptr.hbm [resolvable:$true] %s193
          %s195 = sshll.u32 %s187, 4
          %s196 = int_to_ptr.vmem [resolvable:$true] %s195
          %201 = dma.hbm_to_vmem [thread:$0]  %s194, 2048, %s196, %s184, 128, 128, 8
        $region32: #{tpu_custom_call.1} parent=27 // pred_fallthru
          _
      $region28: #{tpu_custom_call.1} parent=5 // pred_fallthru
        _
      %p202 = scmp.le.s32.totalorder 1, %s17
      %p203 = scmp.lt.s32.totalorder %s17, 3
      %p204 = pnand %p202, %p203
      %p205 = pneg %p204
      // Predicated region
      $region33: #{tpu_custom_call.1} parent=5 // pred_check
        _
      $region34: #{tpu_custom_call.1} parent=5 // pred_check_branch
        %207 = sbr.rel (%p204) target = $region36
      $region35: #{tpu_custom_call.1} parent=5 // pred_region
        %s208 = ssub.s32 %s17, 1
        %s209 = sand.u32 %s30, 1
        %s210 = scalar_lea.sflag [#allocation3], %s209
        %s211 = sand.u32 %s30, 1
        %s212 = smul.addr %s211, 128
        %s213 = scalar_lea.vmem [#allocation2], %s212
        // Predicated region
        $region37: #{tpu_custom_call.1} parent=35 // pred_check
          %p214 = pneg %p43
        $region38: #{tpu_custom_call.1} parent=35 // pred_check_branch
          %216 = sbr.rel (%p214) target = $region40
        $region39: #{tpu_custom_call.1} parent=35 // pred_region
          %218 = dma.done %s210, 2048
        $region40: #{tpu_custom_call.1} parent=35 // pred_fallthru
          _
        // Predicated region
        $region41: #{tpu_custom_call.1} parent=35 // pred_check
          %p219 = pneg %p64
        $region42: #{tpu_custom_call.1} parent=35 // pred_check_branch
          %221 = sbr.rel (%p219) target = $region44
        $region43: #{tpu_custom_call.1} parent=35 // pred_region
          %223 = dma.done [#allocation6], 16
        $region44: #{tpu_custom_call.1} parent=35 // pred_fallthru
          _
        // Predicated region
        $region45: #{tpu_custom_call.1} parent=35 // pred_check
          %p224 = pneg %p106
        $region46: #{tpu_custom_call.1} parent=35 // pred_check_branch
          %226 = sbr.rel (%p224) target = $region48
        $region47: #{tpu_custom_call.1} parent=35 // pred_region
          %228 = dma.done [#allocation6], 18432
        $region48: #{tpu_custom_call.1} parent=35 // pred_fallthru
          _
        %s229 = sand.u32 %s30, 1
        %s230 = scalar_lea.sflag [#allocation3], %s229
        %s231 = sand.u32 %s30, 1
        %s232 = smul.addr %s231, 128
        %s233 = scalar_lea.vmem [#allocation2], %s232
        %p234 = pneg %p43
        %p235 = pneg %p40
        %p236 = pneg %p64
        %p237 = pneg %p61
        %p238 = pneg %p85
        %p239 = pneg %p82
        %p240 = pneg %p106
        %p241 = pneg %p103
        %p242 = pneg %p132
        %p243 = pneg %p129
        %s244 = sand.u32 %s119, 1
        %s245 = scalar_lea.sflag [#allocation4], %s244
        %s246 = sand.u32 %s119, 1
        %s247 = smul.addr %s246, 128
        %s248 = scalar_lea.vmem [#allocation8], %s247
        %s249 = smul.u32 16, %s22
        %s250 = smul.u32 16, %s22
        %v251 = vld [vmem:[#allocation5] sm:$0x1]
        %v253 = vperm.slane %v251, 0
        %v255 = vld [vmem:[%s2] sm:$0x1]
        %v257 = vperm.slane %v255, 0
        loop: start=0, step=1, limit=8
        $region49: #{tpu_custom_call.1} parent=35 // loop_pre_header
          _
        $region50: #{tpu_custom_call.1} parent=35 // loop_header
          %s260 = sphi 0, %s264
          %p261 = scmp.ge.s32.totalorder %s260, 8
        $region51: #{tpu_custom_call.1} parent=35 // loop_header_branch
          %263 = sbr.rel (%p261) target = $region55
        $region52: #{tpu_custom_call.1} parent=35 // loop_body
          %s265 = smul.u32 %s260, 16
          %s266 = scalar_lea.vmem %s213, %s265 [#allocation2]
          %v267 = vld [vmem:[%s266] sm:$0xff]
          %v268 = vld [vmem:[%s266 + $0x8] sm:$0xff]
          %269 = vadd.xlane.f32.xlu0 %v267
          %v270 = vpop.xlane.xlu0 %269
          %271 = vadd.xlane.f32.xlu0 %v268
          %v272 = vpop.xlane.xlu0 %271
          %v273 = vrcp.pop 128.0
          %v274 = vmul.f32 128.0, %v273
          %v275 = vsub.f32 1.0, %v274
          %v276 = vmul.f32 %v273, %v275
          %v277 = vadd.f32 %v273, %v276
          %vm278 = vweird.f32 %v273
          %v279 = vsel %vm278, %v273, %v277
          %v280 = vmul.f32 %v270, %v279
          %v281 = vmul.f32 %v272, %v279
          %v282 = vsub.f32 %v267, %v280
          %v283 = vsub.f32 %v268, %v281
          %v284 = vmul.f32 %v282, %v282
          %v285 = vmul.f32 %v283, %v283
          %286 = vadd.xlane.f32.xlu0 %v284
          %v287 = vpop.xlane.xlu0 %286
          %288 = vadd.xlane.f32.xlu0 %v285
          %v289 = vpop.xlane.xlu0 %288
          %v290 = vmul.f32 %v287, %v279
          %v291 = vmul.f32 %v289, %v279
          %v292 = vadd.f32 %v290, 1e-05
          %v293 = vadd.f32 %v291, 1e-05
          %v294 = vrsqrt.pop %v292
          %v295 = vmul.f32 %v294, %v292
          %v296 = vmul.f32 %v295, %v294
          %v297 = vmul.f32 0.5, %v296
          %v298 = vsub.f32 1.5, %v297
          %v299 = vmul.f32 %v294, %v298
          %vm300 = vweird.f32 %v292
          %vm301 = vweird.f32 %v294
          %vm302 = vmor %vm300, %vm301
          %v303 = vsel %vm302, %v294, %v299
          %v304 = vrsqrt.pop %v293
          %v305 = vmul.f32 %v304, %v293
          %v306 = vmul.f32 %v305, %v304
          %v307 = vmul.f32 0.5, %v306
          %v308 = vsub.f32 1.5, %v307
          %v309 = vmul.f32 %v304, %v308
          %vm310 = vweird.f32 %v293
          %vm311 = vweird.f32 %v304
          %vm312 = vmor %vm310, %vm311
          %v313 = vsel %vm312, %v304, %v309
          %v314 = vmul.f32 %v282, %v303
          %v315 = vmul.f32 %v283, %v313
          %v316 = vmul.f32 %v314, %v253
          %v317 = vmul.f32 %v315, %v253
          %v318 = vadd.f32 %v316, %v257
          %v319 = vadd.f32 %v317, %v257
          %v320 = vxor.u32 %v318, 2147483648
          %v321 = vxor.u32 %v319, 2147483648
          %v322 = vmul.f32 %v320, 1.442695
          %v323 = vpow.pop %v322
          %v324 = vmul.f32 %v321, 1.442695
          %v325 = vpow.pop %v324
          %v326 = vadd.f32 %v323, 1.0
          %v327 = vadd.f32 %v325, 1.0
          %v328 = vrcp.pop %v326
          %v329 = vmul.f32 %v326, %v328
          %v330 = vsub.f32 1.0, %v329
          %v331 = vmul.f32 %v328, %v330
          %v332 = vadd.f32 %v328, %v331
          %vm333 = vweird.f32 %v326
          %vm334 = vweird.f32 %v328
          %vm335 = vmor %vm333, %vm334
          %v336 = vsel %vm335, %v328, %v332
          %v337 = vand.u32 2147483647, %v326
          %vm338 = vcmp.eq.f32.partialorder %v337, 8.507059e+37
          %v339 = vand.u32 %v326, 2147483648
          %v340 = vor.u32 1.1754944e-38, %v339
          %v341 = vsel %vm338, %v340, %v336
          %v342 = vmul.f32 1.0, %v341
          %v343 = vrcp.pop %v327
          %v344 = vmul.f32 %v327, %v343
          %v345 = vsub.f32 1.0, %v344
          %v346 = vmul.f32 %v343, %v345
          %v347 = vadd.f32 %v343, %v346
          %vm348 = vweird.f32 %v327
          %vm349 = vweird.f32 %v343
          %vm350 = vmor %vm348, %vm349
          %v351 = vsel %vm350, %v343, %v347
          %v352 = vand.u32 2147483647, %v327
          %vm353 = vcmp.eq.f32.partialorder %v352, 8.507059e+37
          %v354 = vand.u32 %v327, 2147483648
          %v355 = vor.u32 1.1754944e-38, %v354
          %v356 = vsel %vm353, %v355, %v351
          %v357 = vmul.f32 1.0, %v356
          %v358 = vmul.f32 %v318, %v342
          %v359 = vmul.f32 %v319, %v357
          %v360 = vld [vmem:[#allocation7] sm:$0xff]
          %v361 = vld [vmem:[#allocation7 + $0x8] sm:$0xff]
          %v362 = vld [vmem:[#allocation7 + $0x10] sm:$0xff]
          %v363 = vld [vmem:[#allocation7 + $0x18] sm:$0xff]
          %v364 = vld [vmem:[#allocation7 + $0x20] sm:$0xff]
          %v365 = vld [vmem:[#allocation7 + $0x28] sm:$0xff]
          %v366 = vld [vmem:[#allocation7 + $0x30] sm:$0xff]
          %v367 = vld [vmem:[#allocation7 + $0x38] sm:$0xff]
          %v368 = vld [vmem:[#allocation7 + $0x40] sm:$0xff]
          %v369 = vld [vmem:[#allocation7 + $0x48] sm:$0xff]
          %v370 = vld [vmem:[#allocation7 + $0x50] sm:$0xff]
          %v371 = vld [vmem:[#allocation7 + $0x58] sm:$0xff]
          %v372 = vld [vmem:[#allocation7 + $0x60] sm:$0xff]
          %v373 = vld [vmem:[#allocation7 + $0x68] sm:$0xff]
          %v374 = vld [vmem:[#allocation7 + $0x70] sm:$0xff]
          %v375 = vld [vmem:[#allocation7 + $0x78] sm:$0xff]
          %vm376 = vcmp.ge.f32.partialorder %v318, -3.3
          %vm377 = vcmp.ge.f32.partialorder %v319, -3.3
          %v378 = vsel %vm376, 1, 0
          %v379 = vsel %vm377, 1, 0
          %v380 = vcvt.s32.f32 %v378
          %v381 = vcvt.s32.f32 %v379
          %vm382 = vcmp.ge.f32.partialorder %v318, -2.7
          %vm383 = vcmp.ge.f32.partialorder %v319, -2.7
          %v384 = vsel %vm382, 1, 0
          %v385 = vsel %vm383, 1, 0
          %v386 = vcvt.s32.f32 %v384
          %v387 = vcvt.s32.f32 %v385
          %vm388 = vcmp.ge.f32.partialorder %v318, -2.1
          %vm389 = vcmp.ge.f32.partialorder %v319, -2.1
          %v390 = vsel %vm388, 1, 0
          %v391 = vsel %vm389, 1, 0
          %v392 = vcvt.s32.f32 %v390
          %v393 = vcvt.s32.f32 %v391
          %vm394 = vcmp.ge.f32.partialorder %v318, -1.5
          %vm395 = vcmp.ge.f32.partialorder %v319, -1.5
          %v396 = vsel %vm394, 1, 0
          %v397 = vsel %vm395, 1, 0
          %v398 = vcvt.s32.f32 %v396
          %v399 = vcvt.s32.f32 %v397
          %vm400 = vcmp.ge.f32.partialorder %v318, -0.9
          %vm401 = vcmp.ge.f32.partialorder %v319, -0.9
          %v402 = vsel %vm400, 1, 0
          %v403 = vsel %vm401, 1, 0
          %v404 = vcvt.s32.f32 %v402
          %v405 = vcvt.s32.f32 %v403
          %vm406 = vcmp.ge.f32.partialorder %v318, -0.3
          %vm407 = vcmp.ge.f32.partialorder %v319, -0.3
          %v408 = vsel %vm406, 1, 0
          %v409 = vsel %vm407, 1, 0
          %v410 = vcvt.s32.f32 %v408
          %v411 = vcvt.s32.f32 %v409
          %vm412 = vcmp.ge.f32.partialorder %v318, 0.3
          %vm413 = vcmp.ge.f32.partialorder %v319, 0.3
          %v414 = vsel %vm412, 1, 0
          %v415 = vsel %vm413, 1, 0
          %v416 = vcvt.s32.f32 %v414
          %v417 = vcvt.s32.f32 %v415
          %vm418 = vcmp.ge.f32.partialorder %v318, 0.9
          %vm419 = vcmp.ge.f32.partialorder %v319, 0.9
          %v420 = vsel %vm418, 1, 0
          %v421 = vsel %vm419, 1, 0
          %v422 = vcvt.s32.f32 %v420
          %v423 = vcvt.s32.f32 %v421
          %vm424 = vcmp.ge.f32.partialorder %v318, 1.5
          %vm425 = vcmp.ge.f32.partialorder %v319, 1.5
          %v426 = vsel %vm424, 1, 0
          %v427 = vsel %vm425, 1, 0
          %v428 = vcvt.s32.f32 %v426
          %v429 = vcvt.s32.f32 %v427
          %vm430 = vcmp.ge.f32.partialorder %v318, 2.1
          %vm431 = vcmp.ge.f32.partialorder %v319, 2.1
          %v432 = vsel %vm430, 1, 0
          %v433 = vsel %vm431, 1, 0
          %v434 = vcvt.s32.f32 %v432
          %v435 = vcvt.s32.f32 %v433
          %vm436 = vcmp.ge.f32.partialorder %v318, 2.7
          %vm437 = vcmp.ge.f32.partialorder %v319, 2.7
          %v438 = vsel %vm436, 1, 0
          %v439 = vsel %vm437, 1, 0
          %v440 = vcvt.s32.f32 %v438
          %v441 = vcvt.s32.f32 %v439
          %vm442 = vcmp.ge.f32.partialorder %v318, 3.3
          %vm443 = vcmp.ge.f32.partialorder %v319, 3.3
          %v444 = vsel %vm442, 1, 0
          %v445 = vsel %vm443, 1, 0
          %v446 = vcvt.s32.f32 %v444
          %v447 = vcvt.s32.f32 %v445
          %v448 = vsub.f32 %v380, %v386
          %v449 = vsub.f32 %v381, %v387
          %v450 = vsub.f32 %v386, %v392
          %v451 = vsub.f32 %v387, %v393
          %v452 = vsub.f32 %v392, %v398
          %v453 = vsub.f32 %v393, %v399
          %v454 = vsub.f32 %v398, %v404
          %v455 = vsub.f32 %v399, %v405
          %v456 = vsub.f32 %v404, %v410
          %v457 = vsub.f32 %v405, %v411
          %v458 = vsub.f32 %v410, %v416
          %v459 = vsub.f32 %v411, %v417
          %v460 = vsub.f32 %v416, %v422
          %v461 = vsub.f32 %v417, %v423
          %v462 = vsub.f32 %v422, %v428
          %v463 = vsub.f32 %v423, %v429
          %v464 = vsub.f32 %v428, %v434
          %v465 = vsub.f32 %v429, %v435
          %v466 = vsub.f32 %v434, %v440
          %v467 = vsub.f32 %v435, %v441
          %v468 = vsub.f32 %v440, %v446
          %v469 = vsub.f32 %v441, %v447
          %v470 = vsub.f32 %v318, -3.3
          %v471 = vsub.f32 %v319, -3.3
          %v472 = vmul.f32 %v470, 1.6666666
          %v473 = vmul.f32 %v471, 1.6666666
          %v474 = vsub.f32 %v472, 1.0
          %v475 = vsub.f32 %v473, 1.0
          %v476 = vmul.f32 %v472, %v448
          %v477 = vmul.f32 %v473, %v449
          %v478 = vsub.f32 1.0, %v474
          %v479 = vsub.f32 1.0, %v475
          %v480 = vmul.f32 %v478, %v450
          %v481 = vmul.f32 %v479, %v451
          %v482 = vadd.f32 %v476, %v480
          %v483 = vadd.f32 %v477, %v481
          %v484 = vsub.f32 %v474, 1.0
          %v485 = vsub.f32 %v475, 1.0
          %v486 = vmul.f32 %v474, %v450
          %v487 = vmul.f32 %v475, %v451
          %v488 = vsub.f32 1.0, %v484
          %v489 = vsub.f32 1.0, %v485
          %v490 = vmul.f32 %v488, %v452
          %v491 = vmul.f32 %v489, %v453
          %v492 = vadd.f32 %v486, %v490
          %v493 = vadd.f32 %v487, %v491
          %v494 = vsub.f32 %v484, 1.0
          %v495 = vsub.f32 %v485, 1.0
          %v496 = vmul.f32 %v484, %v452
          %v497 = vmul.f32 %v485, %v453
          %v498 = vsub.f32 1.0, %v494
          %v499 = vsub.f32 1.0, %v495
          %v500 = vmul.f32 %v498, %v454
          %v501 = vmul.f32 %v499, %v455
          %v502 = vadd.f32 %v496, %v500
          %v503 = vadd.f32 %v497, %v501
          %v504 = vsub.f32 %v494, 1.0
          %v505 = vsub.f32 %v495, 1.0
          %v506 = vmul.f32 %v494, %v454
          %v507 = vmul.f32 %v495, %v455
          %v508 = vsub.f32 1.0, %v504
          %v509 = vsub.f32 1.0, %v505
          %v510 = vmul.f32 %v508, %v456
          %v511 = vmul.f32 %v509, %v457
          %v512 = vadd.f32 %v506, %v510
          %v513 = vadd.f32 %v507, %v511
          %v514 = vsub.f32 %v504, 1.0
          %v515 = vsub.f32 %v505, 1.0
          %v516 = vmul.f32 %v504, %v456
          %v517 = vmul.f32 %v505, %v457
          %v518 = vsub.f32 1.0, %v514
          %v519 = vsub.f32 1.0, %v515
          %v520 = vmul.f32 %v518, %v458
          %v521 = vmul.f32 %v519, %v459
          %v522 = vadd.f32 %v516, %v520
          %v523 = vadd.f32 %v517, %v521
          %v524 = vsub.f32 %v514, 1.0
          %v525 = vsub.f32 %v515, 1.0
          %v526 = vmul.f32 %v514, %v458
          %v527 = vmul.f32 %v515, %v459
          %v528 = vsub.f32 1.0, %v524
          %v529 = vsub.f32 1.0, %v525
          %v530 = vmul.f32 %v528, %v460
          %v531 = vmul.f32 %v529, %v461
          %v532 = vadd.f32 %v526, %v530
          %v533 = vadd.f32 %v527, %v531
          %v534 = vsub.f32 %v524, 1.0
          %v535 = vsub.f32 %v525, 1.0
          %v536 = vmul.f32 %v524, %v460
          %v537 = vmul.f32 %v525, %v461
          %v538 = vsub.f32 1.0, %v534
          %v539 = vsub.f32 1.0, %v535
          %v540 = vmul.f32 %v538, %v462
          %v541 = vmul.f32 %v539, %v463
          %v542 = vadd.f32 %v536, %v540
          %v543 = vadd.f32 %v537, %v541
          %v544 = vsub.f32 %v534, 1.0
          %v545 = vsub.f32 %v535, 1.0
          %v546 = vmul.f32 %v534, %v462
          %v547 = vmul.f32 %v535, %v463
          %v548 = vsub.f32 1.0, %v544
          %v549 = vsub.f32 1.0, %v545
          %v550 = vmul.f32 %v548, %v464
          %v551 = vmul.f32 %v549, %v465
          %v552 = vadd.f32 %v546, %v550
          %v553 = vadd.f32 %v547, %v551
          %v554 = vsub.f32 %v544, 1.0
          %v555 = vsub.f32 %v545, 1.0
          %v556 = vmul.f32 %v544, %v464
          %v557 = vmul.f32 %v545, %v465
          %v558 = vsub.f32 1.0, %v554
          %v559 = vsub.f32 1.0, %v555
          %v560 = vmul.f32 %v558, %v466
          %v561 = vmul.f32 %v559, %v467
          %v562 = vadd.f32 %v556, %v560
          %v563 = vadd.f32 %v557, %v561
          %v564 = vsub.f32 %v554, 1.0
          %v565 = vsub.f32 %v555, 1.0
          %v566 = vmul.f32 %v554, %v466
          %v567 = vmul.f32 %v555, %v467
          %v568 = vsub.f32 1.0, %v564
          %v569 = vsub.f32 1.0, %v565
          %v570 = vmul.f32 %v568, %v468
          %v571 = vmul.f32 %v569, %v469
          %v572 = vadd.f32 %v566, %v570
          %v573 = vadd.f32 %v567, %v571
          %v574 = vmul.f32 %v470, 0.8333333
          %v575 = vmul.f32 %v471, 0.8333333
          %v576 = vsub.f32 %v574, 0.5
          %v577 = vsub.f32 %v575, 0.5
          %v578 = vmul.f32 %v574, %v482
          %v579 = vmul.f32 %v575, %v483
          %v580 = vsub.f32 1.0, %v576
          %v581 = vsub.f32 1.0, %v577
          %v582 = vmul.f32 %v580, %v492
          %v583 = vmul.f32 %v581, %v493
          %v584 = vadd.f32 %v578, %v582
          %v585 = vadd.f32 %v579, %v583
          %v586 = vsub.f32 %v576, 0.5
          %v587 = vsub.f32 %v577, 0.5
          %v588 = vmul.f32 %v576, %v492
          %v589 = vmul.f32 %v577, %v493
          %v590 = vsub.f32 1.0, %v586
          %v591 = vsub.f32 1.0, %v587
          %v592 = vmul.f32 %v590, %v502
          %v593 = vmul.f32 %v591, %v503
          %v594 = vadd.f32 %v588, %v592
          %v595 = vadd.f32 %v589, %v593
          %v596 = vsub.f32 %v586, 0.5
          %v597 = vsub.f32 %v587, 0.5
          %v598 = vmul.f32 %v586, %v502
          %v599 = vmul.f32 %v587, %v503
          %v600 = vsub.f32 1.0, %v596
          %v601 = vsub.f32 1.0, %v597
          %v602 = vmul.f32 %v600, %v512
          %v603 = vmul.f32 %v601, %v513
          %v604 = vadd.f32 %v598, %v602
          %v605 = vadd.f32 %v599, %v603
          %v606 = vsub.f32 %v596, 0.5
          %v607 = vsub.f32 %v597, 0.5
          %v608 = vmul.f32 %v596, %v512
          %v609 = vmul.f32 %v597, %v513
          %v610 = vsub.f32 1.0, %v606
          %v611 = vsub.f32 1.0, %v607
          %v612 = vmul.f32 %v610, %v522
          %v613 = vmul.f32 %v611, %v523
          %v614 = vadd.f32 %v608, %v612
          %v615 = vadd.f32 %v609, %v613
          %v616 = vsub.f32 %v606, 0.5
          %v617 = vsub.f32 %v607, 0.5
          %v618 = vmul.f32 %v606, %v522
          %v619 = vmul.f32 %v607, %v523
          %v620 = vsub.f32 1.0, %v616
          %v621 = vsub.f32 1.0, %v617
          %v622 = vmul.f32 %v620, %v532
          %v623 = vmul.f32 %v621, %v533
          %v624 = vadd.f32 %v618, %v622
          %v625 = vadd.f32 %v619, %v623
          %v626 = vsub.f32 %v616, 0.5
          %v627 = vsub.f32 %v617, 0.5
          %v628 = vmul.f32 %v616, %v532
          %v629 = vmul.f32 %v617, %v533
          %v630 = vsub.f32 1.0, %v626
          %v631 = vsub.f32 1.0, %v627
          %v632 = vmul.f32 %v630, %v542
          %v633 = vmul.f32 %v631, %v543
          %v634 = vadd.f32 %v628, %v632
          %v635 = vadd.f32 %v629, %v633
          %v636 = vsub.f32 %v626, 0.5
          %v637 = vsub.f32 %v627, 0.5
          %v638 = vmul.f32 %v626, %v542
          %v639 = vmul.f32 %v627, %v543
          %v640 = vsub.f32 1.0, %v636
          %v641 = vsub.f32 1.0, %v637
          %v642 = vmul.f32 %v640, %v552
          %v643 = vmul.f32 %v641, %v553
          %v644 = vadd.f32 %v638, %v642
          %v645 = vadd.f32 %v639, %v643
          %v646 = vsub.f32 %v636, 0.5
          %v647 = vsub.f32 %v637, 0.5
          %v648 = vmul.f32 %v636, %v552
          %v649 = vmul.f32 %v637, %v553
          %v650 = vsub.f32 1.0, %v646
          %v651 = vsub.f32 1.0, %v647
          %v652 = vmul.f32 %v650, %v562
          %v653 = vmul.f32 %v651, %v563
          %v654 = vadd.f32 %v648, %v652
          %v655 = vadd.f32 %v649, %v653
          %v656 = vsub.f32 %v646, 0.5
          %v657 = vsub.f32 %v647, 0.5
          %v658 = vmul.f32 %v646, %v562
          %v659 = vmul.f32 %v647, %v563
          %v660 = vsub.f32 1.0, %v656
          %v661 = vsub.f32 1.0, %v657
          %v662 = vmul.f32 %v660, %v572
          %v663 = vmul.f32 %v661, %v573
          %v664 = vadd.f32 %v658, %v662
          %v665 = vadd.f32 %v659, %v663
          %v666 = vmul.f32 %v470, 0.5555556
          %v667 = vmul.f32 %v471, 0.5555556
          %v668 = vsub.f32 %v666, 0.33333334
          %v669 = vsub.f32 %v667, 0.33333334
          %v670 = vmul.f32 %v666, %v584
          %v671 = vmul.f32 %v667, %v585
          %v672 = vsub.f32 1.0, %v668
          %v673 = vsub.f32 1.0, %v669
          %v674 = vmul.f32 %v672, %v594
          %v675 = vmul.f32 %v673, %v595
          %v676 = vadd.f32 %v670, %v674
          %v677 = vadd.f32 %v671, %v675
          %v678 = vsub.f32 %v668, 0.33333334
          %v679 = vsub.f32 %v669, 0.33333334
          %v680 = vmul.f32 %v668, %v594
          %v681 = vmul.f32 %v669, %v595
          %v682 = vsub.f32 1.0, %v678
          %v683 = vsub.f32 1.0, %v679
          %v684 = vmul.f32 %v682, %v604
          %v685 = vmul.f32 %v683, %v605
          %v686 = vadd.f32 %v680, %v684
          %v687 = vadd.f32 %v681, %v685
          %v688 = vsub.f32 %v678, 0.33333334
          %v689 = vsub.f32 %v679, 0.33333334
          %v690 = vmul.f32 %v678, %v604
          %v691 = vmul.f32 %v679, %v605
          %v692 = vsub.f32 1.0, %v688
          %v693 = vsub.f32 1.0, %v689
          %v694 = vmul.f32 %v692, %v614
          %v695 = vmul.f32 %v693, %v615
          %v696 = vadd.f32 %v690, %v694
          %v697 = vadd.f32 %v691, %v695
          %v698 = vsub.f32 %v688, 0.33333334
          %v699 = vsub.f32 %v689, 0.33333334
          %v700 = vmul.f32 %v688, %v614
          %v701 = vmul.f32 %v689, %v615
          %v702 = vsub.f32 1.0, %v698
          %v703 = vsub.f32 1.0, %v699
          %v704 = vmul.f32 %v702, %v624
          %v705 = vmul.f32 %v703, %v625
          %v706 = vadd.f32 %v700, %v704
          %v707 = vadd.f32 %v701, %v705
          %v708 = vsub.f32 %v698, 0.33333334
          %v709 = vsub.f32 %v699, 0.33333334
          %v710 = vmul.f32 %v698, %v624
          %v711 = vmul.f32 %v699, %v625
          %v712 = vsub.f32 1.0, %v708
          %v713 = vsub.f32 1.0, %v709
          %v714 = vmul.f32 %v712, %v634
          %v715 = vmul.f32 %v713, %v635
          %v716 = vadd.f32 %v710, %v714
          %v717 = vadd.f32 %v711, %v715
          %v718 = vsub.f32 %v708, 0.33333334
          %v719 = vsub.f32 %v709, 0.33333334
          %v720 = vmul.f32 %v708, %v634
          %v721 = vmul.f32 %v709, %v635
          %v722 = vsub.f32 1.0, %v718
          %v723 = vsub.f32 1.0, %v719
          %v724 = vmul.f32 %v722, %v644
          %v725 = vmul.f32 %v723, %v645
          %v726 = vadd.f32 %v720, %v724
          %v727 = vadd.f32 %v721, %v725
          %v728 = vsub.f32 %v718, 0.33333334
          %v729 = vsub.f32 %v719, 0.33333334
          %v730 = vmul.f32 %v718, %v644
          %v731 = vmul.f32 %v719, %v645
          %v732 = vsub.f32 1.0, %v728
          %v733 = vsub.f32 1.0, %v729
          %v734 = vmul.f32 %v732, %v654
          %v735 = vmul.f32 %v733, %v655
          %v736 = vadd.f32 %v730, %v734
          %v737 = vadd.f32 %v731, %v735
          %v738 = vsub.f32 %v728, 0.33333334
          %v739 = vsub.f32 %v729, 0.33333334
          %v740 = vmul.f32 %v728, %v654
          %v741 = vmul.f32 %v729, %v655
          %v742 = vsub.f32 1.0, %v738
          %v743 = vsub.f32 1.0, %v739
          %v744 = vmul.f32 %v742, %v664
          %v745 = vmul.f32 %v743, %v665
          %v746 = vadd.f32 %v740, %v744
          %v747 = vadd.f32 %v741, %v745
          %v748 = vsub.f32 %v318, -1.5
          %v749 = vsub.f32 %v319, -1.5
          %v750 = vmul.f32 %v748, 2.3333333
          %v751 = vmul.f32 %v749, 2.3333333
          %v752 = vmul.f32 %v750, %v750
          %v753 = vmul.f32 %v751, %v751
          %v754 = vsub.f32 0.0, %v752
          %v755 = vsub.f32 0.0, %v753
          %v756 = vmul.f32 %v754, 1.442695
          %v757 = vpow.pop %v756
          %v758 = vmul.f32 %v755, 1.442695
          %v759 = vpow.pop %v758
          %v760 = vadd.f32 %v676, %v757
          %v761 = vadd.f32 %v677, %v759
          %v762 = vld [vmem:[#allocation7 + $0x80] sm:$0xff]
          %v763 = vld [vmem:[#allocation7 + $0x88] sm:$0xff]
          %v764 = vld [vmem:[#allocation7 + $0x90] sm:$0xff]
          %v765 = vld [vmem:[#allocation7 + $0x98] sm:$0xff]
          %v766 = vld [vmem:[#allocation7 + $0xa0] sm:$0xff]
          %v767 = vld [vmem:[#allocation7 + $0xa8] sm:$0xff]
          %v768 = vld [vmem:[#allocation7 + $0xb0] sm:$0xff]
          %v769 = vld [vmem:[#allocation7 + $0xb8] sm:$0xff]
          %v770 = vld [vmem:[#allocation7 + $0xc0] sm:$0xff]
          %v771 = vld [vmem:[#allocation7 + $0xc8] sm:$0xff]
          %v772 = vld [vmem:[#allocation7 + $0xd0] sm:$0xff]
          %v773 = vld [vmem:[#allocation7 + $0xd8] sm:$0xff]
          %v774 = vld [vmem:[#allocation7 + $0xe0] sm:$0xff]
          %v775 = vld [vmem:[#allocation7 + $0xe8] sm:$0xff]
          %v776 = vld [vmem:[#allocation7 + $0xf0] sm:$0xff]
          %v777 = vld [vmem:[#allocation7 + $0xf8] sm:$0xff]
          %778 = vmatpush.msra.mxu0 %v777
          %779 = vmatpush.msra.mxu0 %v776
          %780 = vmatpush.msra.mxu0 %v775
          %781 = vmatpush.msra.mxu0 %v774
          %782 = vmatpush.msra.mxu0 %v773
          %783 = vmatpush.msra.mxu0 %v772
          %784 = vmatpush.msra.mxu0 %v771
          %785 = vmatpush.msra.mxu0 %v770
          %786 = vmatpush.msra.mxu0 %v769
          %787 = vmatpush.msra.mxu0 %v768
          %788 = vmatpush.msra.mxu0 %v767
          %789 = vmatpush.msra.mxu0 %v766
          %790 = vmatpush.msra.mxu0 %v765
          %791 = vmatpush.msra.mxu0 %v764
          %792 = vmatpush.msra.mxu0 %v763
          %793 = vmatpush.msra.mxu0 %v762
          %794 = vmatmul.f32.gmra.mxu0 %v760
          %v795 = vpop.f32.mrf.mxu0
          %v796 = vadd.f32 0.0, %v795
          %797 = vmatmul.f32.gmra.mxu0 %v761
          %v798 = vpop.f32.mrf.mxu0
          %v799 = vadd.f32 0.0, %v798
          %800 = vdwg.mxu0
          %801 = vmatpush.msra.mxu0 %v375
          %802 = vmatpush.msra.mxu0 %v374
          %803 = vmatpush.msra.mxu0 %v373
          %804 = vmatpush.msra.mxu0 %v372
          %805 = vmatpush.msra.mxu0 %v371
          %806 = vmatpush.msra.mxu0 %v370
          %807 = vmatpush.msra.mxu0 %v369
          %808 = vmatpush.msra.mxu0 %v368
          %809 = vmatpush.msra.mxu0 %v367
          %810 = vmatpush.msra.mxu0 %v366
          %811 = vmatpush.msra.mxu0 %v365
          %812 = vmatpush.msra.mxu0 %v364
          %813 = vmatpush.msra.mxu0 %v363
          %814 = vmatpush.msra.mxu0 %v362
          %815 = vmatpush.msra.mxu0 %v361
          %816 = vmatpush.msra.mxu0 %v360
          %817 = vmatmul.f32.gmra.mxu0 %v358
          %v818 = vpop.f32.mrf.mxu0
          %v819 = vadd.f32 %v796, %v818
          %820 = vmatmul.f32.gmra.mxu0 %v359
          %v821 = vpop.f32.mrf.mxu0
          %v822 = vadd.f32 %v799, %v821
          %823 = vdwg.mxu0
          %v824 = vsub.f32 %v318, -1.0714285
          %v825 = vsub.f32 %v319, -1.0714285
          %v826 = vmul.f32 %v824, 2.3333333
          %v827 = vmul.f32 %v825, 2.3333333
          %v828 = vmul.f32 %v826, %v826
          %v829 = vmul.f32 %v827, %v827
          %v830 = vsub.f32 0.0, %v828
          %v831 = vsub.f32 0.0, %v829
          %v832 = vmul.f32 %v830, 1.442695
          %v833 = vpow.pop %v832
          %v834 = vmul.f32 %v831, 1.442695
          %v835 = vpow.pop %v834
          %v836 = vadd.f32 %v686, %v833
          %v837 = vadd.f32 %v687, %v835
          %v838 = vld [vmem:[#allocation7 + $0x100] sm:$0xff]
          %v839 = vld [vmem:[#allocation7 + $0x108] sm:$0xff]
          %v840 = vld [vmem:[#allocation7 + $0x110] sm:$0xff]
          %v841 = vld [vmem:[#allocation7 + $0x118] sm:$0xff]
          %v842 = vld [vmem:[#allocation7 + $0x120] sm:$0xff]
          %v843 = vld [vmem:[#allocation7 + $0x128] sm:$0xff]
          %v844 = vld [vmem:[#allocation7 + $0x130] sm:$0xff]
          %v845 = vld [vmem:[#allocation7 + $0x138] sm:$0xff]
          %v846 = vld [vmem:[#allocation7 + $0x140] sm:$0xff]
          %v847 = vld [vmem:[#allocation7 + $0x148] sm:$0xff]
          %v848 = vld [vmem:[#allocation7 + $0x150] sm:$0xff]
          %v849 = vld [vmem:[#allocation7 + $0x158] sm:$0xff]
          %v850 = vld [vmem:[#allocation7 + $0x160] sm:$0xff]
          %v851 = vld [vmem:[#allocation7 + $0x168] sm:$0xff]
          %v852 = vld [vmem:[#allocation7 + $0x170] sm:$0xff]
          %v853 = vld [vmem:[#allocation7 + $0x178] sm:$0xff]
          %854 = vmatpush.msra.mxu0 %v853
          %855 = vmatpush.msra.mxu0 %v852
          %856 = vmatpush.msra.mxu0 %v851
          %857 = vmatpush.msra.mxu0 %v850
          %858 = vmatpush.msra.mxu0 %v849
          %859 = vmatpush.msra.mxu0 %v848
          %860 = vmatpush.msra.mxu0 %v847
          %861 = vmatpush.msra.mxu0 %v846
          %862 = vmatpush.msra.mxu0 %v845
          %863 = vmatpush.msra.mxu0 %v844
          %864 = vmatpush.msra.mxu0 %v843
          %865 = vmatpush.msra.mxu0 %v842
          %866 = vmatpush.msra.mxu0 %v841
          %867 = vmatpush.msra.mxu0 %v840
          %868 = vmatpush.msra.mxu0 %v839
          %869 = vmatpush.msra.mxu0 %v838
          %870 = vmatmul.f32.gmra.mxu0 %v836
          %v871 = vpop.f32.mrf.mxu0
          %v872 = vadd.f32 0.0, %v871
          %873 = vmatmul.f32.gmra.mxu0 %v837
          %v874 = vpop.f32.mrf.mxu0
          %v875 = vadd.f32 0.0, %v874
          %876 = vdwg.mxu0
          %v877 = vadd.f32 %v819, %v872
          %v878 = vadd.f32 %v822, %v875
          %v879 = vsub.f32 %v318, -0.64285713
          %v880 = vsub.f32 %v319, -0.64285713
          %v881 = vmul.f32 %v879, 2.3333333
          %v882 = vmul.f32 %v880, 2.3333333
          %v883 = vmul.f32 %v881, %v881
          %v884 = vmul.f32 %v882, %v882
          %v885 = vsub.f32 0.0, %v883
          %v886 = vsub.f32 0.0, %v884
          %v887 = vmul.f32 %v885, 1.442695
          %v888 = vpow.pop %v887
          %v889 = vmul.f32 %v886, 1.442695
          %v890 = vpow.pop %v889
          %v891 = vadd.f32 %v696, %v888
          %v892 = vadd.f32 %v697, %v890
          %v893 = vld [vmem:[#allocation7 + $0x180] sm:$0xff]
          %v894 = vld [vmem:[#allocation7 + $0x188] sm:$0xff]
          %v895 = vld [vmem:[#allocation7 + $0x190] sm:$0xff]
          %v896 = vld [vmem:[#allocation7 + $0x198] sm:$0xff]
          %v897 = vld [vmem:[#allocation7 + $0x1a0] sm:$0xff]
          %v898 = vld [vmem:[#allocation7 + $0x1a8] sm:$0xff]
          %v899 = vld [vmem:[#allocation7 + $0x1b0] sm:$0xff]
          %v900 = vld [vmem:[#allocation7 + $0x1b8] sm:$0xff]
          %v901 = vld [vmem:[#allocation7 + $0x1c0] sm:$0xff]
          %v902 = vld [vmem:[#allocation7 + $0x1c8] sm:$0xff]
          %v903 = vld [vmem:[#allocation7 + $0x1d0] sm:$0xff]
          %v904 = vld [vmem:[#allocation7 + $0x1d8] sm:$0xff]
          %v905 = vld [vmem:[#allocation7 + $0x1e0] sm:$0xff]
          %v906 = vld [vmem:[#allocation7 + $0x1e8] sm:$0xff]
          %v907 = vld [vmem:[#allocation7 + $0x1f0] sm:$0xff]
          %v908 = vld [vmem:[#allocation7 + $0x1f8] sm:$0xff]
          %909 = vmatpush.msra.mxu0 %v908
          %910 = vmatpush.msra.mxu0 %v907
          %911 = vmatpush.msra.mxu0 %v906
          %912 = vmatpush.msra.mxu0 %v905
          %913 = vmatpush.msra.mxu0 %v904
          %914 = vmatpush.msra.mxu0 %v903
          %915 = vmatpush.msra.mxu0 %v902
          %916 = vmatpush.msra.mxu0 %v901
          %917 = vmatpush.msra.mxu0 %v900
          %918 = vmatpush.msra.mxu0 %v899
          %919 = vmatpush.msra.mxu0 %v898
          %920 = vmatpush.msra.mxu0 %v897
          %921 = vmatpush.msra.mxu0 %v896
          %922 = vmatpush.msra.mxu0 %v895
          %923 = vmatpush.msra.mxu0 %v894
          %924 = vmatpush.msra.mxu0 %v893
          %925 = vmatmul.f32.gmra.mxu0 %v891
          %v926 = vpop.f32.mrf.mxu0
          %v927 = vadd.f32 0.0, %v926
          %928 = vmatmul.f32.gmra.mxu0 %v892
          %v929 = vpop.f32.mrf.mxu0
          %v930 = vadd.f32 0.0, %v929
          %931 = vdwg.mxu0
          %v932 = vadd.f32 %v877, %v927
          %v933 = vadd.f32 %v878, %v930
          %v934 = vsub.f32 %v318, -0.21428572
          %v935 = vsub.f32 %v319, -0.21428572
          %v936 = vmul.f32 %v934, 2.3333333
          %v937 = vmul.f32 %v935, 2.3333333
          %v938 = vmul.f32 %v936, %v936
          %v939 = vmul.f32 %v937, %v937
          %v940 = vsub.f32 0.0, %v938
          %v941 = vsub.f32 0.0, %v939
          %v942 = vmul.f32 %v940, 1.442695
          %v943 = vpow.pop %v942
          %v944 = vmul.f32 %v941, 1.442695
          %v945 = vpow.pop %v944
          %v946 = vadd.f32 %v706, %v943
          %v947 = vadd.f32 %v707, %v945
          %v948 = vld [vmem:[#allocation7 + $0x200] sm:$0xff]
          %v949 = vld [vmem:[#allocation7 + $0x208] sm:$0xff]
          %v950 = vld [vmem:[#allocation7 + $0x210] sm:$0xff]
          %v951 = vld [vmem:[#allocation7 + $0x218] sm:$0xff]
          %v952 = vld [vmem:[#allocation7 + $0x220] sm:$0xff]
          %v953 = vld [vmem:[#allocation7 + $0x228] sm:$0xff]
          %v954 = vld [vmem:[#allocation7 + $0x230] sm:$0xff]
          %v955 = vld [vmem:[#allocation7 + $0x238] sm:$0xff]
          %v956 = vld [vmem:[#allocation7 + $0x240] sm:$0xff]
          %v957 = vld [vmem:[#allocation7 + $0x248] sm:$0xff]
          %v958 = vld [vmem:[#allocation7 + $0x250] sm:$0xff]
          %v959 = vld [vmem:[#allocation7 + $0x258] sm:$0xff]
          %v960 = vld [vmem:[#allocation7 + $0x260] sm:$0xff]
          %v961 = vld [vmem:[#allocation7 + $0x268] sm:$0xff]
          %v962 = vld [vmem:[#allocation7 + $0x270] sm:$0xff]
          %v963 = vld [vmem:[#allocation7 + $0x278] sm:$0xff]
          %964 = vmatpush.msra.mxu0 %v963
          %965 = vmatpush.msra.mxu0 %v962
          %966 = vmatpush.msra.mxu0 %v961
          %967 = vmatpush.msra.mxu0 %v960
          %968 = vmatpush.msra.mxu0 %v959
          %969 = vmatpush.msra.mxu0 %v958
          %970 = vmatpush.msra.mxu0 %v957
          %971 = vmatpush.msra.mxu0 %v956
          %972 = vmatpush.msra.mxu0 %v955
          %973 = vmatpush.msra.mxu0 %v954
          %974 = vmatpush.msra.mxu0 %v953
          %975 = vmatpush.msra.mxu0 %v952
          %976 = vmatpush.msra.mxu0 %v951
          %977 = vmatpush.msra.mxu0 %v950
          %978 = vmatpush.msra.mxu0 %v949
          %979 = vmatpush.msra.mxu0 %v948
          %980 = vmatmul.f32.gmra.mxu0 %v946
          %v981 = vpop.f32.mrf.mxu0
          %v982 = vadd.f32 0.0, %v981
          %983 = vmatmul.f32.gmra.mxu0 %v947
          %v984 = vpop.f32.mrf.mxu0
          %v985 = vadd.f32 0.0, %v984
          %986 = vdwg.mxu0
          %v987 = vadd.f32 %v932, %v982
          %v988 = vadd.f32 %v933, %v985
          %v989 = vsub.f32 %v318, 0.21428572
          %v990 = vsub.f32 %v319, 0.21428572
          %v991 = vmul.f32 %v989, 2.3333333
          %v992 = vmul.f32 %v990, 2.3333333
          %v993 = vmul.f32 %v991, %v991
          %v994 = vmul.f32 %v992, %v992
          %v995 = vsub.f32 0.0, %v993
          %v996 = vsub.f32 0.0, %v994
          %v997 = vmul.f32 %v995, 1.442695
          %v998 = vpow.pop %v997
          %v999 = vmul.f32 %v996, 1.442695
          %v1000 = vpow.pop %v999
          %v1001 = vadd.f32 %v716, %v998
          %v1002 = vadd.f32 %v717, %v1000
          %v1003 = vld [vmem:[#allocation7 + $0x280] sm:$0xff]
          %v1004 = vld [vmem:[#allocation7 + $0x288] sm:$0xff]
          %v1005 = vld [vmem:[#allocation7 + $0x290] sm:$0xff]
          %v1006 = vld [vmem:[#allocation7 + $0x298] sm:$0xff]
          %v1007 = vld [vmem:[#allocation7 + $0x2a0] sm:$0xff]
          %v1008 = vld [vmem:[#allocation7 + $0x2a8] sm:$0xff]
          %v1009 = vld [vmem:[#allocation7 + $0x2b0] sm:$0xff]
          %v1010 = vld [vmem:[#allocation7 + $0x2b8] sm:$0xff]
          %v1011 = vld [vmem:[#allocation7 + $0x2c0] sm:$0xff]
          %v1012 = vld [vmem:[#allocation7 + $0x2c8] sm:$0xff]
          %v1013 = vld [vmem:[#allocation7 + $0x2d0] sm:$0xff]
          %v1014 = vld [vmem:[#allocation7 + $0x2d8] sm:$0xff]
          %v1015 = vld [vmem:[#allocation7 + $0x2e0] sm:$0xff]
          %v1016 = vld [vmem:[#allocation7 + $0x2e8] sm:$0xff]
          %v1017 = vld [vmem:[#allocation7 + $0x2f0] sm:$0xff]
          %v1018 = vld [vmem:[#allocation7 + $0x2f8] sm:$0xff]
          %1019 = vmatpush.msra.mxu0 %v1018
          %1020 = vmatpush.msra.mxu0 %v1017
          %1021 = vmatpush.msra.mxu0 %v1016
          %1022 = vmatpush.msra.mxu0 %v1015
          %1023 = vmatpush.msra.mxu0 %v1014
          %1024 = vmatpush.msra.mxu0 %v1013
          %1025 = vmatpush.msra.mxu0 %v1012
          %1026 = vmatpush.msra.mxu0 %v1011
          %1027 = vmatpush.msra.mxu0 %v1010
          %1028 = vmatpush.msra.mxu0 %v1009
          %1029 = vmatpush.msra.mxu0 %v1008
          %1030 = vmatpush.msra.mxu0 %v1007
          %1031 = vmatpush.msra.mxu0 %v1006
          %1032 = vmatpush.msra.mxu0 %v1005
          %1033 = vmatpush.msra.mxu0 %v1004
          %1034 = vmatpush.msra.mxu0 %v1003
          %1035 = vmatmul.f32.gmra.mxu0 %v1001
          %v1036 = vpop.f32.mrf.mxu0
          %v1037 = vadd.f32 0.0, %v1036
          %1038 = vmatmul.f32.gmra.mxu0 %v1002
          %v1039 = vpop.f32.mrf.mxu0
          %v1040 = vadd.f32 0.0, %v1039
          %1041 = vdwg.mxu0
          %v1042 = vadd.f32 %v987, %v1037
          %v1043 = vadd.f32 %v988, %v1040
          %v1044 = vsub.f32 %v318, 0.64285713
          %v1045 = vsub.f32 %v319, 0.64285713
          %v1046 = vmul.f32 %v1044, 2.3333333
          %v1047 = vmul.f32 %v1045, 2.3333333
          %v1048 = vmul.f32 %v1046, %v1046
          %v1049 = vmul.f32 %v1047, %v1047
          %v1050 = vsub.f32 0.0, %v1048
          %v1051 = vsub.f32 0.0, %v1049
          %v1052 = vmul.f32 %v1050, 1.442695
          %v1053 = vpow.pop %v1052
          %v1054 = vmul.f32 %v1051, 1.442695
          %v1055 = vpow.pop %v1054
          %v1056 = vadd.f32 %v726, %v1053
          %v1057 = vadd.f32 %v727, %v1055
          %v1058 = vld [vmem:[#allocation7 + $0x300] sm:$0xff]
          %v1059 = vld [vmem:[#allocation7 + $0x308] sm:$0xff]
          %v1060 = vld [vmem:[#allocation7 + $0x310] sm:$0xff]
          %v1061 = vld [vmem:[#allocation7 + $0x318] sm:$0xff]
          %v1062 = vld [vmem:[#allocation7 + $0x320] sm:$0xff]
          %v1063 = vld [vmem:[#allocation7 + $0x328] sm:$0xff]
          %v1064 = vld [vmem:[#allocation7 + $0x330] sm:$0xff]
          %v1065 = vld [vmem:[#allocation7 + $0x338] sm:$0xff]
          %v1066 = vld [vmem:[#allocation7 + $0x340] sm:$0xff]
          %v1067 = vld [vmem:[#allocation7 + $0x348] sm:$0xff]
          %v1068 = vld [vmem:[#allocation7 + $0x350] sm:$0xff]
          %v1069 = vld [vmem:[#allocation7 + $0x358] sm:$0xff]
          %v1070 = vld [vmem:[#allocation7 + $0x360] sm:$0xff]
          %v1071 = vld [vmem:[#allocation7 + $0x368] sm:$0xff]
          %v1072 = vld [vmem:[#allocation7 + $0x370] sm:$0xff]
          %v1073 = vld [vmem:[#allocation7 + $0x378] sm:$0xff]
          %1074 = vmatpush.msra.mxu0 %v1073
          %1075 = vmatpush.msra.mxu0 %v1072
          %1076 = vmatpush.msra.mxu0 %v1071
          %1077 = vmatpush.msra.mxu0 %v1070
          %1078 = vmatpush.msra.mxu0 %v1069
          %1079 = vmatpush.msra.mxu0 %v1068
          %1080 = vmatpush.msra.mxu0 %v1067
          %1081 = vmatpush.msra.mxu0 %v1066
          %1082 = vmatpush.msra.mxu0 %v1065
          %1083 = vmatpush.msra.mxu0 %v1064
          %1084 = vmatpush.msra.mxu0 %v1063
          %1085 = vmatpush.msra.mxu0 %v1062
          %1086 = vmatpush.msra.mxu0 %v1061
          %1087 = vmatpush.msra.mxu0 %v1060
          %1088 = vmatpush.msra.mxu0 %v1059
          %1089 = vmatpush.msra.mxu0 %v1058
          %1090 = vmatmul.f32.gmra.mxu0 %v1056
          %v1091 = vpop.f32.mrf.mxu0
          %v1092 = vadd.f32 0.0, %v1091
          %1093 = vmatmul.f32.gmra.mxu0 %v1057
          %v1094 = vpop.f32.mrf.mxu0
          %v1095 = vadd.f32 0.0, %v1094
          %1096 = vdwg.mxu0
          %v1097 = vadd.f32 %v1042, %v1092
          %v1098 = vadd.f32 %v1043, %v1095
          %v1099 = vsub.f32 %v318, 1.0714285
          %v1100 = vsub.f32 %v319, 1.0714285
          %v1101 = vmul.f32 %v1099, 2.3333333
          %v1102 = vmul.f32 %v1100, 2.3333333
          %v1103 = vmul.f32 %v1101, %v1101
          %v1104 = vmul.f32 %v1102, %v1102
          %v1105 = vsub.f32 0.0, %v1103
          %v1106 = vsub.f32 0.0, %v1104
          %v1107 = vmul.f32 %v1105, 1.442695
          %v1108 = vpow.pop %v1107
          %v1109 = vmul.f32 %v1106, 1.442695
          %v1110 = vpow.pop %v1109
          %v1111 = vadd.f32 %v736, %v1108
          %v1112 = vadd.f32 %v737, %v1110
          %v1113 = vld [vmem:[#allocation7 + $0x380] sm:$0xff]
          %v1114 = vld [vmem:[#allocation7 + $0x388] sm:$0xff]
          %v1115 = vld [vmem:[#allocation7 + $0x390] sm:$0xff]
          %v1116 = vld [vmem:[#allocation7 + $0x398] sm:$0xff]
          %v1117 = vld [vmem:[#allocation7 + $0x3a0] sm:$0xff]
          %v1118 = vld [vmem:[#allocation7 + $0x3a8] sm:$0xff]
          %v1119 = vld [vmem:[#allocation7 + $0x3b0] sm:$0xff]
          %v1120 = vld [vmem:[#allocation7 + $0x3b8] sm:$0xff]
          %v1121 = vld [vmem:[#allocation7 + $0x3c0] sm:$0xff]
          %v1122 = vld [vmem:[#allocation7 + $0x3c8] sm:$0xff]
          %v1123 = vld [vmem:[#allocation7 + $0x3d0] sm:$0xff]
          %v1124 = vld [vmem:[#allocation7 + $0x3d8] sm:$0xff]
          %v1125 = vld [vmem:[#allocation7 + $0x3e0] sm:$0xff]
          %v1126 = vld [vmem:[#allocation7 + $0x3e8] sm:$0xff]
          %v1127 = vld [vmem:[#allocation7 + $0x3f0] sm:$0xff]
          %v1128 = vld [vmem:[#allocation7 + $0x3f8] sm:$0xff]
          %1129 = vmatpush.msra.mxu0 %v1128
          %1130 = vmatpush.msra.mxu0 %v1127
          %1131 = vmatpush.msra.mxu0 %v1126
          %1132 = vmatpush.msra.mxu0 %v1125
          %1133 = vmatpush.msra.mxu0 %v1124
          %1134 = vmatpush.msra.mxu0 %v1123
          %1135 = vmatpush.msra.mxu0 %v1122
          %1136 = vmatpush.msra.mxu0 %v1121
          %1137 = vmatpush.msra.mxu0 %v1120
          %1138 = vmatpush.msra.mxu0 %v1119
          %1139 = vmatpush.msra.mxu0 %v1118
          %1140 = vmatpush.msra.mxu0 %v1117
          %1141 = vmatpush.msra.mxu0 %v1116
          %1142 = vmatpush.msra.mxu0 %v1115
          %1143 = vmatpush.msra.mxu0 %v1114
          %1144 = vmatpush.msra.mxu0 %v1113
          %1145 = vmatmul.f32.gmra.mxu0 %v1111
          %v1146 = vpop.f32.mrf.mxu0
          %v1147 = vadd.f32 0.0, %v1146
          %1148 = vmatmul.f32.gmra.mxu0 %v1112
          %v1149 = vpop.f32.mrf.mxu0
          %v1150 = vadd.f32 0.0, %v1149
          %1151 = vdwg.mxu0
          %v1152 = vadd.f32 %v1097, %v1147
          %v1153 = vadd.f32 %v1098, %v1150
          %v1154 = vsub.f32 %v318, 1.5
          %v1155 = vsub.f32 %v319, 1.5
          %v1156 = vmul.f32 %v1154, 2.3333333
          %v1157 = vmul.f32 %v1155, 2.3333333
          %v1158 = vmul.f32 %v1156, %v1156
          %v1159 = vmul.f32 %v1157, %v1157
          %v1160 = vsub.f32 0.0, %v1158
          %v1161 = vsub.f32 0.0, %v1159
          %v1162 = vmul.f32 %v1160, 1.442695
          %v1163 = vpow.pop %v1162
          %v1164 = vmul.f32 %v1161, 1.442695
          %v1165 = vpow.pop %v1164
          %v1166 = vadd.f32 %v746, %v1163
          %v1167 = vadd.f32 %v747, %v1165
          %v1168 = vld [vmem:[#allocation7 + $0x400] sm:$0xff]
          %v1169 = vld [vmem:[#allocation7 + $0x408] sm:$0xff]
          %v1170 = vld [vmem:[#allocation7 + $0x410] sm:$0xff]
          %v1171 = vld [vmem:[#allocation7 + $0x418] sm:$0xff]
          %v1172 = vld [vmem:[#allocation7 + $0x420] sm:$0xff]
          %v1173 = vld [vmem:[#allocation7 + $0x428] sm:$0xff]
          %v1174 = vld [vmem:[#allocation7 + $0x430] sm:$0xff]
          %v1175 = vld [vmem:[#allocation7 + $0x438] sm:$0xff]
          %v1176 = vld [vmem:[#allocation7 + $0x440] sm:$0xff]
          %v1177 = vld [vmem:[#allocation7 + $0x448] sm:$0xff]
          %v1178 = vld [vmem:[#allocation7 + $0x450] sm:$0xff]
          %v1179 = vld [vmem:[#allocation7 + $0x458] sm:$0xff]
          %v1180 = vld [vmem:[#allocation7 + $0x460] sm:$0xff]
          %v1181 = vld [vmem:[#allocation7 + $0x468] sm:$0xff]
          %v1182 = vld [vmem:[#allocation7 + $0x470] sm:$0xff]
          %v1183 = vld [vmem:[#allocation7 + $0x478] sm:$0xff]
          %1184 = vmatpush.msra.mxu0 %v1183
          %1185 = vmatpush.msra.mxu0 %v1182
          %1186 = vmatpush.msra.mxu0 %v1181
          %1187 = vmatpush.msra.mxu0 %v1180
          %1188 = vmatpush.msra.mxu0 %v1179
          %1189 = vmatpush.msra.mxu0 %v1178
          %1190 = vmatpush.msra.mxu0 %v1177
          %1191 = vmatpush.msra.mxu0 %v1176
          %1192 = vmatpush.msra.mxu0 %v1175
          %1193 = vmatpush.msra.mxu0 %v1174
          %1194 = vmatpush.msra.mxu0 %v1173
          %1195 = vmatpush.msra.mxu0 %v1172
          %1196 = vmatpush.msra.mxu0 %v1171
          %1197 = vmatpush.msra.mxu0 %v1170
          %1198 = vmatpush.msra.mxu0 %v1169
          %1199 = vmatpush.msra.mxu0 %v1168
          %1200 = vmatmul.f32.gmra.mxu0 %v1166
          %v1201 = vpop.f32.mrf.mxu0
          %v1202 = vadd.f32 0.0, %v1201
          %1203 = vmatmul.f32.gmra.mxu0 %v1167
          %v1204 = vpop.f32.mrf.mxu0
          %v1205 = vadd.f32 0.0, %v1204
          %1206 = vdwg.mxu0
          %v1207 = vadd.f32 %v1152, %v1202
          %v1208 = vadd.f32 %v1153, %v1205
          %s1209 = scalar_lea.vmem %s248, %s265 [#allocation8]
          %1210 = vst [vmem:[%s1209] sm:$0xff] %v1207
          %1211 = vst [vmem:[%s1209 + $0x8] sm:$0xff] %v1208
        $region53: #{tpu_custom_call.1} parent=35 // loop_footer
          %s264 = sadd.s32 1, %s260
        $region54: #{tpu_custom_call.1} parent=35 // loop_footer_branch
          %259 = sbr.rel target = $region50
        $region55: #{tpu_custom_call.1} parent=35 // loop_exit
          _
        %s1212 = sand.u32 %s119, 1
        %s1213 = scalar_lea.sflag [#allocation4], %s1212
        %s1214 = sand.u32 %s119, 1
        %s1215 = smul.addr %s1214, 128
        %s1216 = scalar_lea.vmem [#allocation8], %s1215
        // Predicated region
        $region56: #{tpu_custom_call.1} parent=35 // pred_check
          %p1217 = pneg %p129
        $region57: #{tpu_custom_call.1} parent=35 // pred_check_branch
          %1219 = sbr.rel (%p1217) target = $region59
        $region58: #{tpu_custom_call.1} parent=35 // pred_region
          %s1220 = smul.u32 16, %s22
          %1222 = vsyncadd %s1213, 0
          %s1223 = smul.addr %s1220, 8
          %s1224 = scalar_lea.hbm %s4, %s1223
          %s1225 = sshll.u32 %s1216, 4
          %s1226 = int_to_ptr.vmem [resolvable:$true] %s1225
          %s1227 = sshll.u32 %s1224, 4
          %s1228 = int_to_ptr.hbm [resolvable:$true] %s1227
          %1233 = dma.vmem_to_hbm [thread:$0]  %s1226, 2048, %s1228, %s1213, 128, 128, 8
        $region59: #{tpu_custom_call.1} parent=35 // pred_fallthru
          _
      $region36: #{tpu_custom_call.1} parent=5 // pred_fallthru
        _
      %p1234 = scmp.le.s32.totalorder 2, %s17
      // Predicated region
      $region60: #{tpu_custom_call.1} parent=5 // pred_check
        %p1235 = pneg %p1234
      $region61: #{tpu_custom_call.1} parent=5 // pred_check_branch
        %1237 = sbr.rel (%p1235) target = $region63
      $region62: #{tpu_custom_call.1} parent=5 // pred_region
        %s1238 = ssub.s32 %s17, 2
        // Predicated region
        $region64: #{tpu_custom_call.1} parent=62 // pred_check
          %p1239 = pneg %p135
        $region65: #{tpu_custom_call.1} parent=62 // pred_check_branch
          %1241 = sbr.rel (%p1239) target = $region67
        $region66: #{tpu_custom_call.1} parent=62 // pred_region
          %s1242 = sand.u32 %s120, 1
          %s1243 = scalar_lea.sflag [#allocation4], %s1242
          %s1244 = sand.u32 %s120, 1
          %s1245 = smul.addr %s1244, 128
          %s1246 = scalar_lea.vmem [#allocation8], %s1245
          %1248 = dma.done %s1243, 2048
        $region67: #{tpu_custom_call.1} parent=62 // pred_fallthru
          _
      $region63: #{tpu_custom_call.1} parent=5 // pred_fallthru
        _
    $region6: #{tpu_custom_call.1} parent=1 // loop_footer
      %s21 = sadd.s32 1, %s17
    $region7: #{tpu_custom_call.1} parent=1 // loop_footer_branch
      %16 = sbr.rel target = $region3
    $region8: #{tpu_custom_call.1} parent=1 // loop_exit
      _
    %1249 = vsyncpa [#allocation3], 1
    %s1250 = scalar_lea.sflag [#allocation3], 1
    %1251 = vsyncpa %s1250, 1
    %1252 = vsyncpa [#allocation6], 1
    %1253 = vsyncpa [#allocation4], 1
    %s1254 = scalar_lea.sflag [#allocation4], 1
    %1255 = vsyncpa %s1254, 1

</llo_original>
